<compile_context>
chip_gen: v5e
topology: v5e:2x2
jax: 0.10.0
libtpu: 0.0.40
codegen_flags: <defaults>
</compile_context>

<pallas_src>
import jax
import jax.numpy as jnp
from jax.experimental import pallas as pl
from jax.experimental.pallas import tpu as pltpu  # noqa: F401  (TPU backend)


def mean_conv_kernel(x_ref, w_ref, b_ref, o_ref):
    # x_ref: (Cin, HW)   bf16  -- sublane = channel, lane = spatial
    # w_ref: (Cout, Cin) bf16  -- native Conv2d weight layout
    # b_ref: (Cout, 1)   f32
    # o_ref: (Cout, 1)   f32
    # mean(W @ x, axis=HW) == W @ mean(x, axis=HW)  (fused mean + 1x1 conv)
    p = jnp.dot(w_ref[...], x_ref[...],
                preferred_element_type=jnp.float32)          # (Cout, HW) on MXU
    o_ref[...] = jnp.mean(p, axis=1, keepdims=True) + b_ref[...]


def mean_conv2d(x_nchw, weight, bias):
    """x_nchw: (1, Cin, H, W); weight: (Cout, Cin, 1, 1); bias: (Cout,)."""
    N, C, H, W = x_nchw.shape
    assert N == 1, "module forward is written for batch 1"
    Cout = weight.shape[0]
    HW = H * W

    # Layout plumbing only: contiguous reshapes, no transposes.
    x_slab = x_nchw.reshape(C, HW).astype(jnp.bfloat16)      # (Cin, HW)
    w2 = weight.reshape(Cout, C).astype(jnp.bfloat16)        # (Cout, Cin)
    b2 = bias.reshape(Cout, 1).astype(jnp.float32)           # (Cout, 1)

    out = pl.pallas_call(
        mean_conv_kernel,
        out_shape=jax.ShapeDtypeStruct((Cout, 1), jnp.float32),
        in_specs=[
            pl.BlockSpec((C, HW), lambda: (0, 0)),
            pl.BlockSpec((Cout, C), lambda: (0, 0)),
            pl.BlockSpec((Cout, 1), lambda: (0, 0)),
        ],
        out_specs=pl.BlockSpec((Cout, 1), lambda: (0, 0)),
    )(x_slab, w2, b2)

    return out.reshape(N, Cout, 1, 1)


if __name__ == "__main__":
    key = jax.random.PRNGKey(0)
    k_x, k_w, k_b = jax.random.split(key, 3)

    # Shapes implied by the module: input (1, 2304, 7, 7), Conv2d(2304 -> 96, 1x1).
    N, Cin, H, W = 1, 2304, 7, 7
    Cout = 96

    x = jax.random.normal(k_x, (N, Cin, H, W), dtype=jnp.float32)
    # Deterministic synthetic parameters (not a checkpoint load).
    weight = jax.random.normal(k_w, (Cout, Cin, 1, 1), dtype=jnp.float32) * 0.02
    bias = jax.random.normal(k_b, (Cout,), dtype=jnp.float32) * 0.1

    fwd = jax.jit(mean_conv2d)
    out = jax.block_until_ready(fwd(x, weight, bias))
    assert out.shape == (N, Cout, 1, 1), out.shape

    # Tight check: same-precision reference (bf16-cast inputs, f32 math)
    # validates the kernel itself.
    xb = x.astype(jnp.bfloat16).astype(jnp.float32)
    wb = weight.astype(jnp.bfloat16).astype(jnp.float32)
    ref_bf = jnp.einsum("oc,nc->no", wb.reshape(Cout, Cin),
                        xb.mean((2, 3))).reshape(N, Cout, 1, 1) \
        + bias.reshape(1, Cout, 1, 1)
    assert jnp.allclose(out, ref_bf, atol=1e-3, rtol=1e-3), float(
        jnp.max(jnp.abs(out - ref_bf)))

    # Loose sanity check against the original full-f32 module semantics
    # (difference is only bf16 input quantization of W and x).
    ref_f32 = jnp.einsum("oc,nc->no", weight.reshape(Cout, Cin),
                         x.mean((2, 3))).reshape(N, Cout, 1, 1) \
        + bias.reshape(1, Cout, 1, 1)
    assert jnp.allclose(out, ref_f32, atol=3e-2, rtol=3e-2), float(
        jnp.max(jnp.abs(out - ref_f32)))

    print("KERNEL_OK")
</pallas_src>

<mosaic_0001>
module attributes {stable_mosaic.version = 11 : i64} {
  func.func @mean_conv_kernel(%arg0: memref<2304x49xbf16, #tpu.memory_space<vmem>>, %arg1: memref<96x2304xbf16, #tpu.memory_space<vmem>>, %arg2: memref<96x1xf32, #tpu.memory_space<vmem>>, %arg3: memref<96x1xf32, #tpu.memory_space<vmem>>) attributes {dimension_semantics = [], scalar_prefetch = 0 : i64, scratch_operands = 0 : i64, tpu.core_type = #tpu.core_type<tc>} {
    %c0 = arith.constant 0 : index
    %c0_0 = arith.constant 0 : index
    %0 = vector.load %arg1[%c0, %c0_0] : memref<96x2304xbf16, #tpu.memory_space<vmem>>, vector<96x2304xbf16>
    %c0_1 = arith.constant 0 : index
    %c0_2 = arith.constant 0 : index
    %1 = vector.load %arg0[%c0_1, %c0_2] : memref<2304x49xbf16, #tpu.memory_space<vmem>>, vector<2304x49xbf16>
    %cst = arith.constant dense<0.000000e+00> : vector<96x49xf32>
    %2 = tpu.matmul %0, %1, %cst {dimension_numbers = #tpu.dot_dimension_numbers<[1], [0], [0], [1], [0, 0, 1, 1], [], []>} : vector<96x2304xbf16>, vector<2304x49xbf16>, vector<96x49xf32> -> vector<96x49xf32>
    %cst_3 = arith.constant dense<0.000000e+00> : vector<96xf32>
    %3 = vector.multi_reduction <add>, %2, %cst_3 [1] : vector<96x49xf32> to vector<96xf32>
    %4 = vector.shape_cast %3 : vector<96xf32> to vector<96x1xf32>
    %cst_4 = arith.constant 4.900000e+01 : f32
    %5 = vector.broadcast %cst_4 : f32 to vector<96x1xf32>
    %6 = arith.divf %4, %5 : vector<96x1xf32>
    %c0_5 = arith.constant 0 : index
    %c0_6 = arith.constant 0 : index
    %7 = vector.load %arg2[%c0_5, %c0_6] : memref<96x1xf32, #tpu.memory_space<vmem>>, vector<96x1xf32>
    %8 = arith.addf %6, %7 : vector<96x1xf32>
    %c0_7 = arith.constant 0 : index
    %c0_8 = arith.constant 0 : index
    %9 = vector.load %arg3[%c0_7, %c0_8] : memref<96x1xf32, #tpu.memory_space<vmem>>, vector<96x1xf32>
    tpu.vector_store %arg3[%c0_7, %c0_8], %8 {strides = array<i32>} : memref<96x1xf32, #tpu.memory_space<vmem>>, vector<96x1xf32>,
    return
  }
}

</mosaic_0001>

<llo_original>
// kernel: mean_conv2d.1
$region0: #{mean_conv2d.1}
  #allocation0 [shape = 'u32[]', space=smem, size = 0x4, offset = 0x4, fixed_abs, tag = 'smem constant byte address 0x4 - core index']
  #allocation1 [shape = 'u32[72,128]{1,0:T(1,128)}', space=vmem, size = 0x9000, scoped, tag = 'internal scratch']
  %s0 = inlined_call_operand.vmem [shape: bf16[2304,49], index: 0, kind: input, shape index: {}]
  %s1 = inlined_call_operand.vmem [shape: bf16[96,2304], index: 1, kind: input, shape index: {}]
  %s2 = inlined_call_operand.vmem [shape: f32[96,1], index: 2, kind: input, shape index: {}]
  %s3 = inlined_call_operand.vmem [shape: f32[96,1], index: 3, kind: output, shape index: {}]
  %s4 = sld [smem:[#allocation0]]
  $region22: #{mean_conv2d.1} parent=0
    _
  %s6 = ssub.s32 1, %s4
  %s7 = scalar_select 0, %s6, %s4
  // Predicated region
  $region2: #{mean_conv2d.1} parent=0 // pred_check
    _
  $region3: #{mean_conv2d.1} parent=0 // pred_check_branch
    %9 = sbr.rel (0) target = $region5
  $region4: #{mean_conv2d.1} parent=0 // pred_region
    _
  $region5: #{mean_conv2d.1} parent=0 // pred_fallthru
    _
  // Predicated region
  $region6: #{mean_conv2d.1} parent=0 // pred_check
    _
  $region7: #{mean_conv2d.1} parent=0 // pred_check_branch
    %11 = sbr.rel (0) target = $region9
  $region8: #{mean_conv2d.1} parent=0 // pred_region
    _
  $region9: #{mean_conv2d.1} parent=0 // pred_fallthru
    _
  // Predicated region
  $region10: #{mean_conv2d.1} parent=0 // pred_check
    _
  $region11: #{mean_conv2d.1} parent=0 // pred_check_branch
    %13 = sbr.rel (0) target = $region13
  $region12: #{mean_conv2d.1} parent=0 // pred_region
    _
  $region13: #{mean_conv2d.1} parent=0 // pred_fallthru
    _
  %v14 = vld [vmem:[%s1] sm:$0xff]
  %v15 = vld [vmem:[%s1 + $0x8] sm:$0xff]
  %v16 = vld [vmem:[%s1 + $0x10] sm:$0xff]
  %v17 = vld [vmem:[%s1 + $0x18] sm:$0xff]
  %v18 = vld [vmem:[%s1 + $0x20] sm:$0xff]
  %v19 = vld [vmem:[%s1 + $0x28] sm:$0xff]
  %v20 = vld [vmem:[%s1 + $0x30] sm:$0xff]
  %v21 = vld [vmem:[%s1 + $0x38] sm:$0xff]
  %v22 = vld [vmem:[%s1 + $0x40] sm:$0xff]
  %v23 = vld [vmem:[%s1 + $0x48] sm:$0xff]
  %v24 = vld [vmem:[%s1 + $0x50] sm:$0xff]
  %v25 = vld [vmem:[%s1 + $0x58] sm:$0xff]
  %v26 = vld [vmem:[%s1 + $0x60] sm:$0xff]
  %v27 = vld [vmem:[%s1 + $0x68] sm:$0xff]
  %v28 = vld [vmem:[%s1 + $0x70] sm:$0xff]
  %v29 = vld [vmem:[%s1 + $0x78] sm:$0xff]
  %v30 = vld [vmem:[%s1 + $0x80] sm:$0xff]
  %v31 = vld [vmem:[%s1 + $0x88] sm:$0xff]
  %v32 = vld [vmem:[%s1 + $0x90] sm:$0xff]
  %v33 = vld [vmem:[%s1 + $0x98] sm:$0xff]
  %v34 = vld [vmem:[%s1 + $0xa0] sm:$0xff]
  %v35 = vld [vmem:[%s1 + $0xa8] sm:$0xff]
  %v36 = vld [vmem:[%s1 + $0xb0] sm:$0xff]
  %v37 = vld [vmem:[%s1 + $0xb8] sm:$0xff]
  %v38 = vld [vmem:[%s1 + $0xc0] sm:$0xff]
  %v39 = vld [vmem:[%s1 + $0xc8] sm:$0xff]
  %v40 = vld [vmem:[%s1 + $0xd0] sm:$0xff]
  %v41 = vld [vmem:[%s1 + $0xd8] sm:$0xff]
  %v42 = vld [vmem:[%s1 + $0xe0] sm:$0xff]
  %v43 = vld [vmem:[%s1 + $0xe8] sm:$0xff]
  %v44 = vld [vmem:[%s1 + $0xf0] sm:$0xff]
  %v45 = vld [vmem:[%s1 + $0xf8] sm:$0xff]
  %v46 = vld [vmem:[%s1 + $0x100] sm:$0xff]
  %v47 = vld [vmem:[%s1 + $0x108] sm:$0xff]
  %v48 = vld [vmem:[%s1 + $0x110] sm:$0xff]
  %v49 = vld [vmem:[%s1 + $0x118] sm:$0xff]
  %v50 = vld [vmem:[%s1 + $0x120] sm:$0xff]
  %v51 = vld [vmem:[%s1 + $0x128] sm:$0xff]
  %v52 = vld [vmem:[%s1 + $0x130] sm:$0xff]
  %v53 = vld [vmem:[%s1 + $0x138] sm:$0xff]
  %v54 = vld [vmem:[%s1 + $0x140] sm:$0xff]
  %v55 = vld [vmem:[%s1 + $0x148] sm:$0xff]
  %v56 = vld [vmem:[%s1 + $0x150] sm:$0xff]
  %v57 = vld [vmem:[%s1 + $0x158] sm:$0xff]
  %v58 = vld [vmem:[%s1 + $0x160] sm:$0xff]
  %v59 = vld [vmem:[%s1 + $0x168] sm:$0xff]
  %v60 = vld [vmem:[%s1 + $0x170] sm:$0xff]
  %v61 = vld [vmem:[%s1 + $0x178] sm:$0xff]
  %v62 = vld [vmem:[%s1 + $0x180] sm:$0xff]
  %v63 = vld [vmem:[%s1 + $0x188] sm:$0xff]
  %v64 = vld [vmem:[%s1 + $0x190] sm:$0xff]
  %v65 = vld [vmem:[%s1 + $0x198] sm:$0xff]
  %v66 = vld [vmem:[%s1 + $0x1a0] sm:$0xff]
  %v67 = vld [vmem:[%s1 + $0x1a8] sm:$0xff]
  %v68 = vld [vmem:[%s1 + $0x1b0] sm:$0xff]
  %v69 = vld [vmem:[%s1 + $0x1b8] sm:$0xff]
  %v70 = vld [vmem:[%s1 + $0x1c0] sm:$0xff]
  %v71 = vld [vmem:[%s1 + $0x1c8] sm:$0xff]
  %v72 = vld [vmem:[%s1 + $0x1d0] sm:$0xff]
  %v73 = vld [vmem:[%s1 + $0x1d8] sm:$0xff]
  %v74 = vld [vmem:[%s1 + $0x1e0] sm:$0xff]
  %v75 = vld [vmem:[%s1 + $0x1e8] sm:$0xff]
  %v76 = vld [vmem:[%s1 + $0x1f0] sm:$0xff]
  %v77 = vld [vmem:[%s1 + $0x1f8] sm:$0xff]
  %v78 = vld [vmem:[%s1 + $0x200] sm:$0xff]
  %v79 = vld [vmem:[%s1 + $0x208] sm:$0xff]
  %v80 = vld [vmem:[%s1 + $0x210] sm:$0xff]
  %v81 = vld [vmem:[%s1 + $0x218] sm:$0xff]
  %v82 = vld [vmem:[%s1 + $0x220] sm:$0xff]
  %v83 = vld [vmem:[%s1 + $0x228] sm:$0xff]
  %v84 = vld [vmem:[%s1 + $0x230] sm:$0xff]
  %v85 = vld [vmem:[%s1 + $0x238] sm:$0xff]
  %v86 = vld [vmem:[%s1 + $0x240] sm:$0xff]
  %v87 = vld [vmem:[%s1 + $0x248] sm:$0xff]
  %v88 = vld [vmem:[%s1 + $0x250] sm:$0xff]
  %v89 = vld [vmem:[%s1 + $0x258] sm:$0xff]
  %v90 = vld [vmem:[%s1 + $0x260] sm:$0xff]
  %v91 = vld [vmem:[%s1 + $0x268] sm:$0xff]
  %v92 = vld [vmem:[%s1 + $0x270] sm:$0xff]
  %v93 = vld [vmem:[%s1 + $0x278] sm:$0xff]
  %v94 = vld [vmem:[%s1 + $0x280] sm:$0xff]
  %v95 = vld [vmem:[%s1 + $0x288] sm:$0xff]
  %v96 = vld [vmem:[%s1 + $0x290] sm:$0xff]
  %v97 = vld [vmem:[%s1 + $0x298] sm:$0xff]
  %v98 = vld [vmem:[%s1 + $0x2a0] sm:$0xff]
  %v99 = vld [vmem:[%s1 + $0x2a8] sm:$0xff]
  %v100 = vld [vmem:[%s1 + $0x2b0] sm:$0xff]
  %v101 = vld [vmem:[%s1 + $0x2b8] sm:$0xff]
  %v102 = vld [vmem:[%s1 + $0x2c0] sm:$0xff]
  %v103 = vld [vmem:[%s1 + $0x2c8] sm:$0xff]
  %v104 = vld [vmem:[%s1 + $0x2d0] sm:$0xff]
  %v105 = vld [vmem:[%s1 + $0x2d8] sm:$0xff]
  %v106 = vld [vmem:[%s1 + $0x2e0] sm:$0xff]
  %v107 = vld [vmem:[%s1 + $0x2e8] sm:$0xff]
  %v108 = vld [vmem:[%s1 + $0x2f0] sm:$0xff]
  %v109 = vld [vmem:[%s1 + $0x2f8] sm:$0xff]
  %v110 = vld [vmem:[%s1 + $0x300] sm:$0xff]
  %v111 = vld [vmem:[%s1 + $0x308] sm:$0xff]
  %v112 = vld [vmem:[%s1 + $0x310] sm:$0xff]
  %v113 = vld [vmem:[%s1 + $0x318] sm:$0xff]
  %v114 = vld [vmem:[%s1 + $0x320] sm:$0xff]
  %v115 = vld [vmem:[%s1 + $0x328] sm:$0xff]
  %v116 = vld [vmem:[%s1 + $0x330] sm:$0xff]
  %v117 = vld [vmem:[%s1 + $0x338] sm:$0xff]
  %v118 = vld [vmem:[%s1 + $0x340] sm:$0xff]
  %v119 = vld [vmem:[%s1 + $0x348] sm:$0xff]
  %v120 = vld [vmem:[%s1 + $0x350] sm:$0xff]
  %v121 = vld [vmem:[%s1 + $0x358] sm:$0xff]
  %v122 = vld [vmem:[%s0] sm:$0xf]
  %v123 = vld [vmem:[%s0 + $0x4] sm:$0xf]
  %v124 = vld [vmem:[%s0 + $0x8] sm:$0xf]
  %v125 = vld [vmem:[%s0 + $0xc] sm:$0xf]
  %v126 = vld [vmem:[%s0 + $0x10] sm:$0xf]
  %v127 = vld [vmem:[%s0 + $0x14] sm:$0xf]
  %v128 = vld [vmem:[%s0 + $0x18] sm:$0xf]
  %v129 = vld [vmem:[%s0 + $0x1c] sm:$0xf]
  %v130 = vld [vmem:[%s0 + $0x20] sm:$0xf]
  %v131 = vld [vmem:[%s0 + $0x24] sm:$0xf]
  %v132 = vld [vmem:[%s0 + $0x28] sm:$0xf]
  %v133 = vld [vmem:[%s0 + $0x2c] sm:$0xf]
  %v134 = vld [vmem:[%s0 + $0x30] sm:$0xf]
  %v135 = vld [vmem:[%s0 + $0x34] sm:$0xf]
  %v136 = vld [vmem:[%s0 + $0x38] sm:$0xf]
  %v137 = vld [vmem:[%s0 + $0x3c] sm:$0xf]
  %v138 = vld [vmem:[%s0 + $0x40] sm:$0xf]
  %v139 = vld [vmem:[%s0 + $0x44] sm:$0xf]
  %v140 = vld [vmem:[%s0 + $0x48] sm:$0xf]
  %v141 = vld [vmem:[%s0 + $0x4c] sm:$0xf]
  %v142 = vld [vmem:[%s0 + $0x50] sm:$0xf]
  %v143 = vld [vmem:[%s0 + $0x54] sm:$0xf]
  %v144 = vld [vmem:[%s0 + $0x58] sm:$0xf]
  %v145 = vld [vmem:[%s0 + $0x5c] sm:$0xf]
  %v146 = vld [vmem:[%s0 + $0x60] sm:$0xf]
  %v147 = vld [vmem:[%s0 + $0x64] sm:$0xf]
  %v148 = vld [vmem:[%s0 + $0x68] sm:$0xf]
  %v149 = vld [vmem:[%s0 + $0x6c] sm:$0xf]
  %v150 = vld [vmem:[%s0 + $0x70] sm:$0xf]
  %v151 = vld [vmem:[%s0 + $0x74] sm:$0xf]
  %v152 = vld [vmem:[%s0 + $0x78] sm:$0xf]
  %v153 = vld [vmem:[%s0 + $0x7c] sm:$0xf]
  %v154 = vld [vmem:[%s0 + $0x80] sm:$0xf]
  %v155 = vld [vmem:[%s0 + $0x84] sm:$0xf]
  %v156 = vld [vmem:[%s0 + $0x88] sm:$0xf]
  %v157 = vld [vmem:[%s0 + $0x8c] sm:$0xf]
  %v158 = vld [vmem:[%s0 + $0x90] sm:$0xf]
  %v159 = vld [vmem:[%s0 + $0x94] sm:$0xf]
  %v160 = vld [vmem:[%s0 + $0x98] sm:$0xf]
  %v161 = vld [vmem:[%s0 + $0x9c] sm:$0xf]
  %v162 = vld [vmem:[%s0 + $0xa0] sm:$0xf]
  %v163 = vld [vmem:[%s0 + $0xa4] sm:$0xf]
  %v164 = vld [vmem:[%s0 + $0xa8] sm:$0xf]
  %v165 = vld [vmem:[%s0 + $0xac] sm:$0xf]
  %v166 = vld [vmem:[%s0 + $0xb0] sm:$0xf]
  %v167 = vld [vmem:[%s0 + $0xb4] sm:$0xf]
  %v168 = vld [vmem:[%s0 + $0xb8] sm:$0xf]
  %v169 = vld [vmem:[%s0 + $0xbc] sm:$0xf]
  %v170 = vld [vmem:[%s0 + $0xc0] sm:$0xf]
  %v171 = vld [vmem:[%s0 + $0xc4] sm:$0xf]
  %v172 = vld [vmem:[%s0 + $0xc8] sm:$0xf]
  %v173 = vld [vmem:[%s0 + $0xcc] sm:$0xf]
  %v174 = vld [vmem:[%s0 + $0xd0] sm:$0xf]
  %v175 = vld [vmem:[%s0 + $0xd4] sm:$0xf]
  %v176 = vld [vmem:[%s0 + $0xd8] sm:$0xf]
  %v177 = vld [vmem:[%s0 + $0xdc] sm:$0xf]
  %v178 = vld [vmem:[%s0 + $0xe0] sm:$0xf]
  %v179 = vld [vmem:[%s0 + $0xe4] sm:$0xf]
  %v180 = vld [vmem:[%s0 + $0xe8] sm:$0xf]
  %v181 = vld [vmem:[%s0 + $0xec] sm:$0xf]
  %v182 = vld [vmem:[%s0 + $0xf0] sm:$0xf]
  %v183 = vld [vmem:[%s0 + $0xf4] sm:$0xf]
  %v184 = vld [vmem:[%s0 + $0xf8] sm:$0xf]
  %v185 = vld [vmem:[%s0 + $0xfc] sm:$0xf]
  %v186 = vld [vmem:[%s0 + $0x100] sm:$0xf]
  %v187 = vld [vmem:[%s0 + $0x104] sm:$0xf]
  %v188 = vld [vmem:[%s0 + $0x108] sm:$0xf]
  %v189 = vld [vmem:[%s0 + $0x10c] sm:$0xf]
  %v190 = vld [vmem:[%s0 + $0x110] sm:$0xf]
  %v191 = vld [vmem:[%s0 + $0x114] sm:$0xf]
  %v192 = vld [vmem:[%s0 + $0x118] sm:$0xf]
  %v193 = vld [vmem:[%s0 + $0x11c] sm:$0xf]
  %v194 = vld [vmem:[%s0 + $0x120] sm:$0xf]
  %v195 = vld [vmem:[%s0 + $0x124] sm:$0xf]
  %v196 = vld [vmem:[%s0 + $0x128] sm:$0xf]
  %v197 = vld [vmem:[%s0 + $0x12c] sm:$0xf]
  %v198 = vld [vmem:[%s0 + $0x130] sm:$0xf]
  %v199 = vld [vmem:[%s0 + $0x134] sm:$0xf]
  %v200 = vld [vmem:[%s0 + $0x138] sm:$0xf]
  %v201 = vld [vmem:[%s0 + $0x13c] sm:$0xf]
  %v202 = vld [vmem:[%s0 + $0x140] sm:$0xf]
  %v203 = vld [vmem:[%s0 + $0x144] sm:$0xf]
  %v204 = vld [vmem:[%s0 + $0x148] sm:$0xf]
  %v205 = vld [vmem:[%s0 + $0x14c] sm:$0xf]
  %v206 = vld [vmem:[%s0 + $0x150] sm:$0xf]
  %v207 = vld [vmem:[%s0 + $0x154] sm:$0xf]
  %v208 = vld [vmem:[%s0 + $0x158] sm:$0xf]
  %v209 = vld [vmem:[%s0 + $0x15c] sm:$0xf]
  %v210 = vld [vmem:[%s0 + $0x160] sm:$0xf]
  %v211 = vld [vmem:[%s0 + $0x164] sm:$0xf]
  %v212 = vld [vmem:[%s0 + $0x168] sm:$0xf]
  %v213 = vld [vmem:[%s0 + $0x16c] sm:$0xf]
  %v214 = vld [vmem:[%s0 + $0x170] sm:$0xf]
  %v215 = vld [vmem:[%s0 + $0x174] sm:$0xf]
  %v216 = vld [vmem:[%s0 + $0x178] sm:$0xf]
  %v217 = vld [vmem:[%s0 + $0x17c] sm:$0xf]
  %v218 = vld [vmem:[%s0 + $0x180] sm:$0xf]
  %v219 = vld [vmem:[%s0 + $0x184] sm:$0xf]
  %v220 = vld [vmem:[%s0 + $0x188] sm:$0xf]
  %v221 = vld [vmem:[%s0 + $0x18c] sm:$0xf]
  %v222 = vld [vmem:[%s0 + $0x190] sm:$0xf]
  %v223 = vld [vmem:[%s0 + $0x194] sm:$0xf]
  %v224 = vld [vmem:[%s0 + $0x198] sm:$0xf]
  %v225 = vld [vmem:[%s0 + $0x19c] sm:$0xf]
  %v226 = vld [vmem:[%s0 + $0x1a0] sm:$0xf]
  %v227 = vld [vmem:[%s0 + $0x1a4] sm:$0xf]
  %v228 = vld [vmem:[%s0 + $0x1a8] sm:$0xf]
  %v229 = vld [vmem:[%s0 + $0x1ac] sm:$0xf]
  %v230 = vld [vmem:[%s0 + $0x1b0] sm:$0xf]
  %v231 = vld [vmem:[%s0 + $0x1b4] sm:$0xf]
  %v232 = vld [vmem:[%s0 + $0x1b8] sm:$0xf]
  %v233 = vld [vmem:[%s0 + $0x1bc] sm:$0xf]
  %v234 = vld [vmem:[%s0 + $0x1c0] sm:$0xf]
  %v235 = vld [vmem:[%s0 + $0x1c4] sm:$0xf]
  %v236 = vld [vmem:[%s0 + $0x1c8] sm:$0xf]
  %v237 = vld [vmem:[%s0 + $0x1cc] sm:$0xf]
  %v238 = vld [vmem:[%s0 + $0x1d0] sm:$0xf]
  %v239 = vld [vmem:[%s0 + $0x1d4] sm:$0xf]
  %v240 = vld [vmem:[%s0 + $0x1d8] sm:$0xf]
  %v241 = vld [vmem:[%s0 + $0x1dc] sm:$0xf]
  %v242 = vld [vmem:[%s0 + $0x1e0] sm:$0xf]
  %v243 = vld [vmem:[%s0 + $0x1e4] sm:$0xf]
  %v244 = vld [vmem:[%s0 + $0x1e8] sm:$0xf]
  %v245 = vld [vmem:[%s0 + $0x1ec] sm:$0xf]
  %v246 = vld [vmem:[%s0 + $0x1f0] sm:$0xf]
  %v247 = vld [vmem:[%s0 + $0x1f4] sm:$0xf]
  %v248 = vld [vmem:[%s0 + $0x1f8] sm:$0xf]
  %v249 = vld [vmem:[%s0 + $0x1fc] sm:$0xf]
  %v250 = vld [vmem:[%s0 + $0x200] sm:$0xf]
  %v251 = vld [vmem:[%s0 + $0x204] sm:$0xf]
  %v252 = vld [vmem:[%s0 + $0x208] sm:$0xf]
  %v253 = vld [vmem:[%s0 + $0x20c] sm:$0xf]
  %v254 = vld [vmem:[%s0 + $0x210] sm:$0xf]
  %v255 = vld [vmem:[%s0 + $0x214] sm:$0xf]
  %v256 = vld [vmem:[%s0 + $0x218] sm:$0xf]
  %v257 = vld [vmem:[%s0 + $0x21c] sm:$0xf]
  %v258 = vld [vmem:[%s0 + $0x220] sm:$0xf]
  %v259 = vld [vmem:[%s0 + $0x224] sm:$0xf]
  %v260 = vld [vmem:[%s0 + $0x228] sm:$0xf]
  %v261 = vld [vmem:[%s0 + $0x22c] sm:$0xf]
  %v262 = vld [vmem:[%s0 + $0x230] sm:$0xf]
  %v263 = vld [vmem:[%s0 + $0x234] sm:$0xf]
  %v264 = vld [vmem:[%s0 + $0x238] sm:$0xf]
  %v265 = vld [vmem:[%s0 + $0x23c] sm:$0xf]
  %v266 = vld [vmem:[%s0 + $0x240] sm:$0xf]
  %v267 = vld [vmem:[%s0 + $0x244] sm:$0xf]
  %v268 = vld [vmem:[%s0 + $0x248] sm:$0xf]
  %v269 = vld [vmem:[%s0 + $0x24c] sm:$0xf]
  %v270 = vld [vmem:[%s0 + $0x250] sm:$0xf]
  %v271 = vld [vmem:[%s0 + $0x254] sm:$0xf]
  %v272 = vld [vmem:[%s0 + $0x258] sm:$0xf]
  %v273 = vld [vmem:[%s0 + $0x25c] sm:$0xf]
  %v274 = vld [vmem:[%s0 + $0x260] sm:$0xf]
  %v275 = vld [vmem:[%s0 + $0x264] sm:$0xf]
  %v276 = vld [vmem:[%s0 + $0x268] sm:$0xf]
  %v277 = vld [vmem:[%s0 + $0x26c] sm:$0xf]
  %v278 = vld [vmem:[%s0 + $0x270] sm:$0xf]
  %v279 = vld [vmem:[%s0 + $0x274] sm:$0xf]
  %v280 = vld [vmem:[%s0 + $0x278] sm:$0xf]
  %v281 = vld [vmem:[%s0 + $0x27c] sm:$0xf]
  %v282 = vld [vmem:[%s0 + $0x280] sm:$0xf]
  %v283 = vld [vmem:[%s0 + $0x284] sm:$0xf]
  %v284 = vld [vmem:[%s0 + $0x288] sm:$0xf]
  %v285 = vld [vmem:[%s0 + $0x28c] sm:$0xf]
  %v286 = vld [vmem:[%s0 + $0x290] sm:$0xf]
  %v287 = vld [vmem:[%s0 + $0x294] sm:$0xf]
  %v288 = vld [vmem:[%s0 + $0x298] sm:$0xf]
  %v289 = vld [vmem:[%s0 + $0x29c] sm:$0xf]
  %v290 = vld [vmem:[%s0 + $0x2a0] sm:$0xf]
  %v291 = vld [vmem:[%s0 + $0x2a4] sm:$0xf]
  %v292 = vld [vmem:[%s0 + $0x2a8] sm:$0xf]
  %v293 = vld [vmem:[%s0 + $0x2ac] sm:$0xf]
  %v294 = vld [vmem:[%s0 + $0x2b0] sm:$0xf]
  %v295 = vld [vmem:[%s0 + $0x2b4] sm:$0xf]
  %v296 = vld [vmem:[%s0 + $0x2b8] sm:$0xf]
  %v297 = vld [vmem:[%s0 + $0x2bc] sm:$0xf]
  %v298 = vld [vmem:[%s0 + $0x2c0] sm:$0xf]
  %v299 = vld [vmem:[%s0 + $0x2c4] sm:$0xf]
  %v300 = vld [vmem:[%s0 + $0x2c8] sm:$0xf]
  %v301 = vld [vmem:[%s0 + $0x2cc] sm:$0xf]
  %v302 = vld [vmem:[%s0 + $0x2d0] sm:$0xf]
  %v303 = vld [vmem:[%s0 + $0x2d4] sm:$0xf]
  %v304 = vld [vmem:[%s0 + $0x2d8] sm:$0xf]
  %v305 = vld [vmem:[%s0 + $0x2dc] sm:$0xf]
  %v306 = vld [vmem:[%s0 + $0x2e0] sm:$0xf]
  %v307 = vld [vmem:[%s0 + $0x2e4] sm:$0xf]
  %v308 = vld [vmem:[%s0 + $0x2e8] sm:$0xf]
  %v309 = vld [vmem:[%s0 + $0x2ec] sm:$0xf]
  %v310 = vld [vmem:[%s0 + $0x2f0] sm:$0xf]
  %v311 = vld [vmem:[%s0 + $0x2f4] sm:$0xf]
  %v312 = vld [vmem:[%s0 + $0x2f8] sm:$0xf]
  %v313 = vld [vmem:[%s0 + $0x2fc] sm:$0xf]
  %v314 = vld [vmem:[%s0 + $0x300] sm:$0xf]
  %v315 = vld [vmem:[%s0 + $0x304] sm:$0xf]
  %v316 = vld [vmem:[%s0 + $0x308] sm:$0xf]
  %v317 = vld [vmem:[%s0 + $0x30c] sm:$0xf]
  %v318 = vld [vmem:[%s0 + $0x310] sm:$0xf]
  %v319 = vld [vmem:[%s0 + $0x314] sm:$0xf]
  %v320 = vld [vmem:[%s0 + $0x318] sm:$0xf]
  %v321 = vld [vmem:[%s0 + $0x31c] sm:$0xf]
  %v322 = vld [vmem:[%s0 + $0x320] sm:$0xf]
  %v323 = vld [vmem:[%s0 + $0x324] sm:$0xf]
  %v324 = vld [vmem:[%s0 + $0x328] sm:$0xf]
  %v325 = vld [vmem:[%s0 + $0x32c] sm:$0xf]
  %v326 = vld [vmem:[%s0 + $0x330] sm:$0xf]
  %v327 = vld [vmem:[%s0 + $0x334] sm:$0xf]
  %v328 = vld [vmem:[%s0 + $0x338] sm:$0xf]
  %v329 = vld [vmem:[%s0 + $0x33c] sm:$0xf]
  %v330 = vld [vmem:[%s0 + $0x340] sm:$0xf]
  %v331 = vld [vmem:[%s0 + $0x344] sm:$0xf]
  %v332 = vld [vmem:[%s0 + $0x348] sm:$0xf]
  %v333 = vld [vmem:[%s0 + $0x34c] sm:$0xf]
  %v334 = vld [vmem:[%s0 + $0x350] sm:$0xf]
  %v335 = vld [vmem:[%s0 + $0x354] sm:$0xf]
  %v336 = vld [vmem:[%s0 + $0x358] sm:$0xf]
  %v337 = vld [vmem:[%s0 + $0x35c] sm:$0xf]
  %v338 = vld [vmem:[%s0 + $0x360] sm:$0xf]
  %v339 = vld [vmem:[%s0 + $0x364] sm:$0xf]
  %v340 = vld [vmem:[%s0 + $0x368] sm:$0xf]
  %v341 = vld [vmem:[%s0 + $0x36c] sm:$0xf]
  %v342 = vld [vmem:[%s0 + $0x370] sm:$0xf]
  %v343 = vld [vmem:[%s0 + $0x374] sm:$0xf]
  %v344 = vld [vmem:[%s0 + $0x378] sm:$0xf]
  %v345 = vld [vmem:[%s0 + $0x37c] sm:$0xf]
  %v346 = vld [vmem:[%s0 + $0x380] sm:$0xf]
  %v347 = vld [vmem:[%s0 + $0x384] sm:$0xf]
  %v348 = vld [vmem:[%s0 + $0x388] sm:$0xf]
  %v349 = vld [vmem:[%s0 + $0x38c] sm:$0xf]
  %v350 = vld [vmem:[%s0 + $0x390] sm:$0xf]
  %v351 = vld [vmem:[%s0 + $0x394] sm:$0xf]
  %v352 = vld [vmem:[%s0 + $0x398] sm:$0xf]
  %v353 = vld [vmem:[%s0 + $0x39c] sm:$0xf]
  %v354 = vld [vmem:[%s0 + $0x3a0] sm:$0xf]
  %v355 = vld [vmem:[%s0 + $0x3a4] sm:$0xf]
  %v356 = vld [vmem:[%s0 + $0x3a8] sm:$0xf]
  %v357 = vld [vmem:[%s0 + $0x3ac] sm:$0xf]
  %v358 = vld [vmem:[%s0 + $0x3b0] sm:$0xf]
  %v359 = vld [vmem:[%s0 + $0x3b4] sm:$0xf]
  %v360 = vld [vmem:[%s0 + $0x3b8] sm:$0xf]
  %v361 = vld [vmem:[%s0 + $0x3bc] sm:$0xf]
  %v362 = vld [vmem:[%s0 + $0x3c0] sm:$0xf]
  %v363 = vld [vmem:[%s0 + $0x3c4] sm:$0xf]
  %v364 = vld [vmem:[%s0 + $0x3c8] sm:$0xf]
  %v365 = vld [vmem:[%s0 + $0x3cc] sm:$0xf]
  %v366 = vld [vmem:[%s0 + $0x3d0] sm:$0xf]
  %v367 = vld [vmem:[%s0 + $0x3d4] sm:$0xf]
  %v368 = vld [vmem:[%s0 + $0x3d8] sm:$0xf]
  %v369 = vld [vmem:[%s0 + $0x3dc] sm:$0xf]
  %v370 = vld [vmem:[%s0 + $0x3e0] sm:$0xf]
  %v371 = vld [vmem:[%s0 + $0x3e4] sm:$0xf]
  %v372 = vld [vmem:[%s0 + $0x3e8] sm:$0xf]
  %v373 = vld [vmem:[%s0 + $0x3ec] sm:$0xf]
  %v374 = vld [vmem:[%s0 + $0x3f0] sm:$0xf]
  %v375 = vld [vmem:[%s0 + $0x3f4] sm:$0xf]
  %v376 = vld [vmem:[%s0 + $0x3f8] sm:$0xf]
  %v377 = vld [vmem:[%s0 + $0x3fc] sm:$0xf]
  %v378 = vld [vmem:[%s0 + $0x400] sm:$0xf]
  %v379 = vld [vmem:[%s0 + $0x404] sm:$0xf]
  %v380 = vld [vmem:[%s0 + $0x408] sm:$0xf]
  %v381 = vld [vmem:[%s0 + $0x40c] sm:$0xf]
  %v382 = vld [vmem:[%s0 + $0x410] sm:$0xf]
  %v383 = vld [vmem:[%s0 + $0x414] sm:$0xf]
  %v384 = vld [vmem:[%s0 + $0x418] sm:$0xf]
  %v385 = vld [vmem:[%s0 + $0x41c] sm:$0xf]
  %v386 = vld [vmem:[%s0 + $0x420] sm:$0xf]
  %v387 = vld [vmem:[%s0 + $0x424] sm:$0xf]
  %v388 = vld [vmem:[%s0 + $0x428] sm:$0xf]
  %v389 = vld [vmem:[%s0 + $0x42c] sm:$0xf]
  %v390 = vld [vmem:[%s0 + $0x430] sm:$0xf]
  %v391 = vld [vmem:[%s0 + $0x434] sm:$0xf]
  %v392 = vld [vmem:[%s0 + $0x438] sm:$0xf]
  %v393 = vld [vmem:[%s0 + $0x43c] sm:$0xf]
  %v394 = vld [vmem:[%s0 + $0x440] sm:$0xf]
  %v395 = vld [vmem:[%s0 + $0x444] sm:$0xf]
  %v396 = vld [vmem:[%s0 + $0x448] sm:$0xf]
  %v397 = vld [vmem:[%s0 + $0x44c] sm:$0xf]
  %v398 = vld [vmem:[%s0 + $0x450] sm:$0xf]
  %v399 = vld [vmem:[%s0 + $0x454] sm:$0xf]
  %v400 = vld [vmem:[%s0 + $0x458] sm:$0xf]
  %v401 = vld [vmem:[%s0 + $0x45c] sm:$0xf]
  %v402 = vld [vmem:[%s0 + $0x460] sm:$0xf]
  %v403 = vld [vmem:[%s0 + $0x464] sm:$0xf]
  %v404 = vld [vmem:[%s0 + $0x468] sm:$0xf]
  %v405 = vld [vmem:[%s0 + $0x46c] sm:$0xf]
  %v406 = vld [vmem:[%s0 + $0x470] sm:$0xf]
  %v407 = vld [vmem:[%s0 + $0x474] sm:$0xf]
  %v408 = vld [vmem:[%s0 + $0x478] sm:$0xf]
  %v409 = vld [vmem:[%s0 + $0x47c] sm:$0xf]
  %v518 = vunpack.c.l.b16 %v14
  %v519 = vunpack.c.h.b16 %v14
  %v520 = vunpack.c.l.b16 %v15
  %v521 = vunpack.c.h.b16 %v15
  %v522 = vunpack.c.l.b16 %v16
  %v523 = vunpack.c.h.b16 %v16
  %v524 = vunpack.c.l.b16 %v17
  %v525 = vunpack.c.h.b16 %v17
  %v526 = vunpack.c.l.b16 %v18
  %v527 = vunpack.c.h.b16 %v18
  %v528 = vunpack.c.l.b16 %v19
  %v529 = vunpack.c.h.b16 %v19
  %v530 = vunpack.c.l.b16 %v20
  %v531 = vunpack.c.h.b16 %v20
  %v532 = vunpack.c.l.b16 %v21
  %v533 = vunpack.c.h.b16 %v21
  %v534 = vunpack.c.l.b16 %v22
  %v535 = vunpack.c.h.b16 %v22
  %v536 = vunpack.c.l.b16 %v23
  %v537 = vunpack.c.h.b16 %v23
  %v538 = vunpack.c.l.b16 %v24
  %v539 = vunpack.c.h.b16 %v24
  %v540 = vunpack.c.l.b16 %v25
  %v541 = vunpack.c.h.b16 %v25
  %v542 = vunpack.c.l.b16 %v26
  %v543 = vunpack.c.h.b16 %v26
  %v544 = vunpack.c.l.b16 %v27
  %v545 = vunpack.c.h.b16 %v27
  %v546 = vunpack.c.l.b16 %v28
  %v547 = vunpack.c.h.b16 %v28
  %v548 = vunpack.c.l.b16 %v29
  %v549 = vunpack.c.h.b16 %v29
  %v550 = vunpack.c.l.b16 %v30
  %v551 = vunpack.c.h.b16 %v30
  %v552 = vunpack.c.l.b16 %v31
  %v553 = vunpack.c.h.b16 %v31
  %v554 = vunpack.c.l.b16 %v32
  %v555 = vunpack.c.h.b16 %v32
  %v556 = vunpack.c.l.b16 %v33
  %v557 = vunpack.c.h.b16 %v33
  %v558 = vunpack.c.l.b16 %v34
  %v559 = vunpack.c.h.b16 %v34
  %v560 = vunpack.c.l.b16 %v35
  %v561 = vunpack.c.h.b16 %v35
  %v562 = vunpack.c.l.b16 %v36
  %v563 = vunpack.c.h.b16 %v36
  %v564 = vunpack.c.l.b16 %v37
  %v565 = vunpack.c.h.b16 %v37
  %v566 = vunpack.c.l.b16 %v38
  %v567 = vunpack.c.h.b16 %v38
  %v568 = vunpack.c.l.b16 %v39
  %v569 = vunpack.c.h.b16 %v39
  %v570 = vunpack.c.l.b16 %v40
  %v571 = vunpack.c.h.b16 %v40
  %v572 = vunpack.c.l.b16 %v41
  %v573 = vunpack.c.h.b16 %v41
  %v574 = vunpack.c.l.b16 %v42
  %v575 = vunpack.c.h.b16 %v42
  %v576 = vunpack.c.l.b16 %v43
  %v577 = vunpack.c.h.b16 %v43
  %v578 = vunpack.c.l.b16 %v44
  %v579 = vunpack.c.h.b16 %v44
  %v580 = vunpack.c.l.b16 %v45
  %v581 = vunpack.c.h.b16 %v45
  %v582 = vunpack.c.l.b16 %v46
  %v583 = vunpack.c.h.b16 %v46
  %v584 = vunpack.c.l.b16 %v47
  %v585 = vunpack.c.h.b16 %v47
  %v586 = vunpack.c.l.b16 %v48
  %v587 = vunpack.c.h.b16 %v48
  %v588 = vunpack.c.l.b16 %v49
  %v589 = vunpack.c.h.b16 %v49
  %v590 = vunpack.c.l.b16 %v50
  %v591 = vunpack.c.h.b16 %v50
  %v592 = vunpack.c.l.b16 %v51
  %v593 = vunpack.c.h.b16 %v51
  %v594 = vunpack.c.l.b16 %v52
  %v595 = vunpack.c.h.b16 %v52
  %v596 = vunpack.c.l.b16 %v53
  %v597 = vunpack.c.h.b16 %v53
  %v598 = vunpack.c.l.b16 %v54
  %v599 = vunpack.c.h.b16 %v54
  %v600 = vunpack.c.l.b16 %v55
  %v601 = vunpack.c.h.b16 %v55
  %v602 = vunpack.c.l.b16 %v56
  %v603 = vunpack.c.h.b16 %v56
  %v604 = vunpack.c.l.b16 %v57
  %v605 = vunpack.c.h.b16 %v57
  %v606 = vunpack.c.l.b16 %v58
  %v607 = vunpack.c.h.b16 %v58
  %v608 = vunpack.c.l.b16 %v59
  %v609 = vunpack.c.h.b16 %v59
  %v610 = vunpack.c.l.b16 %v60
  %v611 = vunpack.c.h.b16 %v60
  %v612 = vunpack.c.l.b16 %v61
  %v613 = vunpack.c.h.b16 %v61
  %v614 = vunpack.c.l.b16 %v62
  %v615 = vunpack.c.h.b16 %v62
  %v616 = vunpack.c.l.b16 %v63
  %v617 = vunpack.c.h.b16 %v63
  %v618 = vunpack.c.l.b16 %v64
  %v619 = vunpack.c.h.b16 %v64
  %v620 = vunpack.c.l.b16 %v65
  %v621 = vunpack.c.h.b16 %v65
  %v622 = vunpack.c.l.b16 %v66
  %v623 = vunpack.c.h.b16 %v66
  %v624 = vunpack.c.l.b16 %v67
  %v625 = vunpack.c.h.b16 %v67
  %v626 = vunpack.c.l.b16 %v68
  %v627 = vunpack.c.h.b16 %v68
  %v628 = vunpack.c.l.b16 %v69
  %v629 = vunpack.c.h.b16 %v69
  %v630 = vunpack.c.l.b16 %v70
  %v631 = vunpack.c.h.b16 %v70
  %v632 = vunpack.c.l.b16 %v71
  %v633 = vunpack.c.h.b16 %v71
  %v634 = vunpack.c.l.b16 %v72
  %v635 = vunpack.c.h.b16 %v72
  %v636 = vunpack.c.l.b16 %v73
  %v637 = vunpack.c.h.b16 %v73
  %v638 = vunpack.c.l.b16 %v74
  %v639 = vunpack.c.h.b16 %v74
  %v640 = vunpack.c.l.b16 %v75
  %v641 = vunpack.c.h.b16 %v75
  %v642 = vunpack.c.l.b16 %v76
  %v643 = vunpack.c.h.b16 %v76
  %v644 = vunpack.c.l.b16 %v77
  %v645 = vunpack.c.h.b16 %v77
  %v646 = vunpack.c.l.b16 %v78
  %v647 = vunpack.c.h.b16 %v78
  %v648 = vunpack.c.l.b16 %v79
  %v649 = vunpack.c.h.b16 %v79
  %v650 = vunpack.c.l.b16 %v80
  %v651 = vunpack.c.h.b16 %v80
  %v652 = vunpack.c.l.b16 %v81
  %v653 = vunpack.c.h.b16 %v81
  %v654 = vunpack.c.l.b16 %v82
  %v655 = vunpack.c.h.b16 %v82
  %v656 = vunpack.c.l.b16 %v83
  %v657 = vunpack.c.h.b16 %v83
  %v658 = vunpack.c.l.b16 %v84
  %v659 = vunpack.c.h.b16 %v84
  %v660 = vunpack.c.l.b16 %v85
  %v661 = vunpack.c.h.b16 %v85
  %v662 = vunpack.c.l.b16 %v86
  %v663 = vunpack.c.h.b16 %v86
  %v664 = vunpack.c.l.b16 %v87
  %v665 = vunpack.c.h.b16 %v87
  %v666 = vunpack.c.l.b16 %v88
  %v667 = vunpack.c.h.b16 %v88
  %v668 = vunpack.c.l.b16 %v89
  %v669 = vunpack.c.h.b16 %v89
  %v670 = vunpack.c.l.b16 %v90
  %v671 = vunpack.c.h.b16 %v90
  %v672 = vunpack.c.l.b16 %v91
  %v673 = vunpack.c.h.b16 %v91
  %v674 = vunpack.c.l.b16 %v92
  %v675 = vunpack.c.h.b16 %v92
  %v676 = vunpack.c.l.b16 %v93
  %v677 = vunpack.c.h.b16 %v93
  %v678 = vunpack.c.l.b16 %v94
  %v679 = vunpack.c.h.b16 %v94
  %v680 = vunpack.c.l.b16 %v95
  %v681 = vunpack.c.h.b16 %v95
  %v682 = vunpack.c.l.b16 %v96
  %v683 = vunpack.c.h.b16 %v96
  %v684 = vunpack.c.l.b16 %v97
  %v685 = vunpack.c.h.b16 %v97
  %v686 = vunpack.c.l.b16 %v98
  %v687 = vunpack.c.h.b16 %v98
  %v688 = vunpack.c.l.b16 %v99
  %v689 = vunpack.c.h.b16 %v99
  %v690 = vunpack.c.l.b16 %v100
  %v691 = vunpack.c.h.b16 %v100
  %v692 = vunpack.c.l.b16 %v101
  %v693 = vunpack.c.h.b16 %v101
  %v694 = vunpack.c.l.b16 %v102
  %v695 = vunpack.c.h.b16 %v102
  %v696 = vunpack.c.l.b16 %v103
  %v697 = vunpack.c.h.b16 %v103
  %v698 = vunpack.c.l.b16 %v104
  %v699 = vunpack.c.h.b16 %v104
  %v700 = vunpack.c.l.b16 %v105
  %v701 = vunpack.c.h.b16 %v105
  %v702 = vunpack.c.l.b16 %v106
  %v703 = vunpack.c.h.b16 %v106
  %v704 = vunpack.c.l.b16 %v107
  %v705 = vunpack.c.h.b16 %v107
  %v706 = vunpack.c.l.b16 %v108
  %v707 = vunpack.c.h.b16 %v108
  %v708 = vunpack.c.l.b16 %v109
  %v709 = vunpack.c.h.b16 %v109
  %v710 = vunpack.c.l.b16 %v110
  %v711 = vunpack.c.h.b16 %v110
  %v712 = vunpack.c.l.b16 %v111
  %v713 = vunpack.c.h.b16 %v111
  %v714 = vunpack.c.l.b16 %v112
  %v715 = vunpack.c.h.b16 %v112
  %v716 = vunpack.c.l.b16 %v113
  %v717 = vunpack.c.h.b16 %v113
  %v718 = vunpack.c.l.b16 %v114
  %v719 = vunpack.c.h.b16 %v114
  %v720 = vunpack.c.l.b16 %v115
  %v721 = vunpack.c.h.b16 %v115
  %v722 = vunpack.c.l.b16 %v116
  %v723 = vunpack.c.h.b16 %v116
  %v724 = vunpack.c.l.b16 %v117
  %v725 = vunpack.c.h.b16 %v117
  %v726 = vunpack.c.l.b16 %v118
  %v727 = vunpack.c.h.b16 %v118
  %v728 = vunpack.c.l.b16 %v119
  %v729 = vunpack.c.h.b16 %v119
  %v730 = vunpack.c.l.b16 %v120
  %v731 = vunpack.c.h.b16 %v120
  %v732 = vunpack.c.l.b16 %v121
  %v733 = vunpack.c.h.b16 %v121
  %v734 = vpack.c.b16 %v536, %v518
  %v735 = vpack.c.b16 %v537, %v519
  %v736 = vpack.c.b16 %v538, %v520
  %v737 = vpack.c.b16 %v539, %v521
  %v738 = vpack.c.b16 %v540, %v522
  %v739 = vpack.c.b16 %v541, %v523
  %v740 = vpack.c.b16 %v542, %v524
  %v741 = vpack.c.b16 %v543, %v525
  %v742 = vpack.c.b16 %v544, %v526
  %v743 = vpack.c.b16 %v545, %v527
  %v744 = vpack.c.b16 %v546, %v528
  %v745 = vpack.c.b16 %v547, %v529
  %v746 = vpack.c.b16 %v548, %v530
  %v747 = vpack.c.b16 %v549, %v531
  %v748 = vpack.c.b16 %v550, %v532
  %v749 = vpack.c.b16 %v551, %v533
  %v750 = vpack.c.b16 %v552, %v534
  %v751 = vpack.c.b16 %v553, %v535
  %v752 = vpack.c.b16 %v572, %v554
  %v753 = vpack.c.b16 %v573, %v555
  %v754 = vpack.c.b16 %v574, %v556
  %v755 = vpack.c.b16 %v575, %v557
  %v756 = vpack.c.b16 %v576, %v558
  %v757 = vpack.c.b16 %v577, %v559
  %v758 = vpack.c.b16 %v578, %v560
  %v759 = vpack.c.b16 %v579, %v561
  %v760 = vpack.c.b16 %v580, %v562
  %v761 = vpack.c.b16 %v581, %v563
  %v762 = vpack.c.b16 %v582, %v564
  %v763 = vpack.c.b16 %v583, %v565
  %v764 = vpack.c.b16 %v584, %v566
  %v765 = vpack.c.b16 %v585, %v567
  %v766 = vpack.c.b16 %v586, %v568
  %v767 = vpack.c.b16 %v587, %v569
  %v768 = vpack.c.b16 %v588, %v570
  %v769 = vpack.c.b16 %v589, %v571
  %v770 = vpack.c.b16 %v608, %v590
  %v771 = vpack.c.b16 %v609, %v591
  %v772 = vpack.c.b16 %v610, %v592
  %v773 = vpack.c.b16 %v611, %v593
  %v774 = vpack.c.b16 %v612, %v594
  %v775 = vpack.c.b16 %v613, %v595
  %v776 = vpack.c.b16 %v614, %v596
  %v777 = vpack.c.b16 %v615, %v597
  %v778 = vpack.c.b16 %v616, %v598
  %v779 = vpack.c.b16 %v617, %v599
  %v780 = vpack.c.b16 %v618, %v600
  %v781 = vpack.c.b16 %v619, %v601
  %v782 = vpack.c.b16 %v620, %v602
  %v783 = vpack.c.b16 %v621, %v603
  %v784 = vpack.c.b16 %v622, %v604
  %v785 = vpack.c.b16 %v623, %v605
  %v786 = vpack.c.b16 %v624, %v606
  %v787 = vpack.c.b16 %v625, %v607
  %v788 = vpack.c.b16 %v644, %v626
  %v789 = vpack.c.b16 %v645, %v627
  %v790 = vpack.c.b16 %v646, %v628
  %v791 = vpack.c.b16 %v647, %v629
  %v792 = vpack.c.b16 %v648, %v630
  %v793 = vpack.c.b16 %v649, %v631
  %v794 = vpack.c.b16 %v650, %v632
  %v795 = vpack.c.b16 %v651, %v633
  %v796 = vpack.c.b16 %v652, %v634
  %v797 = vpack.c.b16 %v653, %v635
  %v798 = vpack.c.b16 %v654, %v636
  %v799 = vpack.c.b16 %v655, %v637
  %v800 = vpack.c.b16 %v656, %v638
  %v801 = vpack.c.b16 %v657, %v639
  %v802 = vpack.c.b16 %v658, %v640
  %v803 = vpack.c.b16 %v659, %v641
  %v804 = vpack.c.b16 %v660, %v642
  %v805 = vpack.c.b16 %v661, %v643
  %v806 = vpack.c.b16 %v680, %v662
  %v807 = vpack.c.b16 %v681, %v663
  %v808 = vpack.c.b16 %v682, %v664
  %v809 = vpack.c.b16 %v683, %v665
  %v810 = vpack.c.b16 %v684, %v666
  %v811 = vpack.c.b16 %v685, %v667
  %v812 = vpack.c.b16 %v686, %v668
  %v813 = vpack.c.b16 %v687, %v669
  %v814 = vpack.c.b16 %v688, %v670
  %v815 = vpack.c.b16 %v689, %v671
  %v816 = vpack.c.b16 %v690, %v672
  %v817 = vpack.c.b16 %v691, %v673
  %v818 = vpack.c.b16 %v692, %v674
  %v819 = vpack.c.b16 %v693, %v675
  %v820 = vpack.c.b16 %v694, %v676
  %v821 = vpack.c.b16 %v695, %v677
  %v822 = vpack.c.b16 %v696, %v678
  %v823 = vpack.c.b16 %v697, %v679
  %v824 = vpack.c.b16 %v716, %v698
  %v825 = vpack.c.b16 %v717, %v699
  %v826 = vpack.c.b16 %v718, %v700
  %v827 = vpack.c.b16 %v719, %v701
  %v828 = vpack.c.b16 %v720, %v702
  %v829 = vpack.c.b16 %v721, %v703
  %v830 = vpack.c.b16 %v722, %v704
  %v831 = vpack.c.b16 %v723, %v705
  %v832 = vpack.c.b16 %v724, %v706
  %v833 = vpack.c.b16 %v725, %v707
  %v834 = vpack.c.b16 %v726, %v708
  %v835 = vpack.c.b16 %v727, %v709
  %v836 = vpack.c.b16 %v728, %v710
  %v837 = vpack.c.b16 %v729, %v711
  %v838 = vpack.c.b16 %v730, %v712
  %v839 = vpack.c.b16 %v731, %v713
  %v840 = vpack.c.b16 %v732, %v714
  %v841 = vpack.c.b16 %v733, %v715
  %v1238 = vunpack.c.l.b16 %v122
  %v1239 = vunpack.c.l.b16 %v123
  %v1240 = vunpack.c.l.b16 %v124
  %v1241 = vunpack.c.l.b16 %v125
  %v1242 = vunpack.c.l.b16 %v126
  %v1243 = vunpack.c.l.b16 %v127
  %v1244 = vunpack.c.l.b16 %v128
  %v1245 = vunpack.c.l.b16 %v129
  %v1246 = vunpack.c.l.b16 %v130
  %v1247 = vunpack.c.l.b16 %v131
  %v1248 = vunpack.c.l.b16 %v132
  %v1249 = vunpack.c.l.b16 %v133
  %v1250 = vunpack.c.l.b16 %v134
  %v1251 = vunpack.c.l.b16 %v135
  %v1252 = vunpack.c.l.b16 %v136
  %v1253 = vunpack.c.l.b16 %v137
  %v1254 = vunpack.c.l.b16 %v138
  %v1255 = vunpack.c.l.b16 %v139
  %v1256 = vunpack.c.l.b16 %v140
  %v1257 = vunpack.c.l.b16 %v141
  %v1258 = vunpack.c.l.b16 %v142
  %v1259 = vunpack.c.l.b16 %v143
  %v1260 = vunpack.c.l.b16 %v144
  %v1261 = vunpack.c.l.b16 %v145
  %v1262 = vunpack.c.l.b16 %v146
  %v1263 = vunpack.c.l.b16 %v147
  %v1264 = vunpack.c.l.b16 %v148
  %v1265 = vunpack.c.l.b16 %v149
  %v1266 = vunpack.c.l.b16 %v150
  %v1267 = vunpack.c.l.b16 %v151
  %v1268 = vunpack.c.l.b16 %v152
  %v1269 = vunpack.c.l.b16 %v153
  %v1270 = vunpack.c.l.b16 %v154
  %v1271 = vunpack.c.l.b16 %v155
  %v1272 = vunpack.c.l.b16 %v156
  %v1273 = vunpack.c.l.b16 %v157
  %v1274 = vunpack.c.l.b16 %v158
  %v1275 = vunpack.c.l.b16 %v159
  %v1276 = vunpack.c.l.b16 %v160
  %v1277 = vunpack.c.l.b16 %v161
  %v1278 = vunpack.c.l.b16 %v162
  %v1279 = vunpack.c.l.b16 %v163
  %v1280 = vunpack.c.l.b16 %v164
  %v1281 = vunpack.c.l.b16 %v165
  %v1282 = vunpack.c.l.b16 %v166
  %v1283 = vunpack.c.l.b16 %v167
  %v1284 = vunpack.c.l.b16 %v168
  %v1285 = vunpack.c.l.b16 %v169
  %v1286 = vunpack.c.l.b16 %v170
  %v1287 = vunpack.c.l.b16 %v171
  %v1288 = vunpack.c.l.b16 %v172
  %v1289 = vunpack.c.l.b16 %v173
  %v1290 = vunpack.c.l.b16 %v174
  %v1291 = vunpack.c.l.b16 %v175
  %v1292 = vunpack.c.l.b16 %v176
  %v1293 = vunpack.c.l.b16 %v177
  %v1294 = vunpack.c.l.b16 %v178
  %v1295 = vunpack.c.l.b16 %v179
  %v1296 = vunpack.c.l.b16 %v180
  %v1297 = vunpack.c.l.b16 %v181
  %v1298 = vunpack.c.l.b16 %v182
  %v1299 = vunpack.c.l.b16 %v183
  %v1300 = vunpack.c.l.b16 %v184
  %v1301 = vunpack.c.l.b16 %v185
  %v1302 = vunpack.c.l.b16 %v186
  %v1303 = vunpack.c.l.b16 %v187
  %v1304 = vunpack.c.l.b16 %v188
  %v1305 = vunpack.c.l.b16 %v189
  %v1306 = vunpack.c.l.b16 %v190
  %v1307 = vunpack.c.l.b16 %v191
  %v1308 = vunpack.c.l.b16 %v192
  %v1309 = vunpack.c.l.b16 %v193
  %v1310 = vunpack.c.l.b16 %v194
  %v1311 = vunpack.c.l.b16 %v195
  %v1312 = vunpack.c.l.b16 %v196
  %v1313 = vunpack.c.l.b16 %v197
  %v1314 = vunpack.c.l.b16 %v198
  %v1315 = vunpack.c.l.b16 %v199
  %v1316 = vunpack.c.l.b16 %v200
  %v1317 = vunpack.c.l.b16 %v201
  %v1318 = vunpack.c.l.b16 %v202
  %v1319 = vunpack.c.l.b16 %v203
  %v1320 = vunpack.c.l.b16 %v204
  %v1321 = vunpack.c.l.b16 %v205
  %v1322 = vunpack.c.l.b16 %v206
  %v1323 = vunpack.c.l.b16 %v207
  %v1324 = vunpack.c.l.b16 %v208
  %v1325 = vunpack.c.l.b16 %v209
  %v1326 = vunpack.c.l.b16 %v210
  %v1327 = vunpack.c.l.b16 %v211
  %v1328 = vunpack.c.l.b16 %v212
  %v1329 = vunpack.c.l.b16 %v213
  %v1330 = vunpack.c.l.b16 %v214
  %v1331 = vunpack.c.l.b16 %v215
  %v1332 = vunpack.c.l.b16 %v216
  %v1333 = vunpack.c.l.b16 %v217
  %v1334 = vunpack.c.l.b16 %v218
  %v1335 = vunpack.c.l.b16 %v219
  %v1336 = vunpack.c.l.b16 %v220
  %v1337 = vunpack.c.l.b16 %v221
  %v1338 = vunpack.c.l.b16 %v222
  %v1339 = vunpack.c.l.b16 %v223
  %v1340 = vunpack.c.l.b16 %v224
  %v1341 = vunpack.c.l.b16 %v225
  %v1342 = vunpack.c.l.b16 %v226
  %v1343 = vunpack.c.l.b16 %v227
  %v1344 = vunpack.c.l.b16 %v228
  %v1345 = vunpack.c.l.b16 %v229
  %v1346 = vunpack.c.l.b16 %v230
  %v1347 = vunpack.c.l.b16 %v231
  %v1348 = vunpack.c.l.b16 %v232
  %v1349 = vunpack.c.l.b16 %v233
  %v1350 = vunpack.c.l.b16 %v234
  %v1351 = vunpack.c.l.b16 %v235
  %v1352 = vunpack.c.l.b16 %v236
  %v1353 = vunpack.c.l.b16 %v237
  %v1354 = vunpack.c.l.b16 %v238
  %v1355 = vunpack.c.l.b16 %v239
  %v1356 = vunpack.c.l.b16 %v240
  %v1357 = vunpack.c.l.b16 %v241
  %v1358 = vunpack.c.l.b16 %v242
  %v1359 = vunpack.c.l.b16 %v243
  %v1360 = vunpack.c.l.b16 %v244
  %v1361 = vunpack.c.l.b16 %v245
  %v1362 = vunpack.c.l.b16 %v246
  %v1363 = vunpack.c.l.b16 %v247
  %v1364 = vunpack.c.l.b16 %v248
  %v1365 = vunpack.c.l.b16 %v249
  %v1366 = vunpack.c.l.b16 %v250
  %v1367 = vunpack.c.l.b16 %v251
  %v1368 = vunpack.c.l.b16 %v252
  %v1369 = vunpack.c.l.b16 %v253
  %v1370 = vunpack.c.l.b16 %v254
  %v1371 = vunpack.c.l.b16 %v255
  %v1372 = vunpack.c.l.b16 %v256
  %v1373 = vunpack.c.l.b16 %v257
  %v1374 = vunpack.c.l.b16 %v258
  %v1375 = vunpack.c.l.b16 %v259
  %v1376 = vunpack.c.l.b16 %v260
  %v1377 = vunpack.c.l.b16 %v261
  %v1378 = vunpack.c.l.b16 %v262
  %v1379 = vunpack.c.l.b16 %v263
  %v1380 = vunpack.c.l.b16 %v264
  %v1381 = vunpack.c.l.b16 %v265
  %v1382 = vunpack.c.l.b16 %v266
  %v1383 = vunpack.c.l.b16 %v267
  %v1384 = vunpack.c.l.b16 %v268
  %v1385 = vunpack.c.l.b16 %v269
  %v1386 = vunpack.c.l.b16 %v270
  %v1387 = vunpack.c.l.b16 %v271
  %v1388 = vunpack.c.l.b16 %v272
  %v1389 = vunpack.c.l.b16 %v273
  %v1390 = vunpack.c.l.b16 %v274
  %v1391 = vunpack.c.l.b16 %v275
  %v1392 = vunpack.c.l.b16 %v276
  %v1393 = vunpack.c.l.b16 %v277
  %v1394 = vunpack.c.l.b16 %v278
  %v1395 = vunpack.c.l.b16 %v279
  %v1396 = vunpack.c.l.b16 %v280
  %v1397 = vunpack.c.l.b16 %v281
  %v1398 = vunpack.c.l.b16 %v282
  %v1399 = vunpack.c.l.b16 %v283
  %v1400 = vunpack.c.l.b16 %v284
  %v1401 = vunpack.c.l.b16 %v285
  %v1402 = vunpack.c.l.b16 %v286
  %v1403 = vunpack.c.l.b16 %v287
  %v1404 = vunpack.c.l.b16 %v288
  %v1405 = vunpack.c.l.b16 %v289
  %v1406 = vunpack.c.l.b16 %v290
  %v1407 = vunpack.c.l.b16 %v291
  %v1408 = vunpack.c.l.b16 %v292
  %v1409 = vunpack.c.l.b16 %v293
  %v1410 = vunpack.c.l.b16 %v294
  %v1411 = vunpack.c.l.b16 %v295
  %v1412 = vunpack.c.l.b16 %v296
  %v1413 = vunpack.c.l.b16 %v297
  %v1414 = vunpack.c.l.b16 %v298
  %v1415 = vunpack.c.l.b16 %v299
  %v1416 = vunpack.c.l.b16 %v300
  %v1417 = vunpack.c.l.b16 %v301
  %v1418 = vunpack.c.l.b16 %v302
  %v1419 = vunpack.c.l.b16 %v303
  %v1420 = vunpack.c.l.b16 %v304
  %v1421 = vunpack.c.l.b16 %v305
  %v1422 = vunpack.c.l.b16 %v306
  %v1423 = vunpack.c.l.b16 %v307
  %v1424 = vunpack.c.l.b16 %v308
  %v1425 = vunpack.c.l.b16 %v309
  %v1426 = vunpack.c.l.b16 %v310
  %v1427 = vunpack.c.l.b16 %v311
  %v1428 = vunpack.c.l.b16 %v312
  %v1429 = vunpack.c.l.b16 %v313
  %v1430 = vunpack.c.l.b16 %v314
  %v1431 = vunpack.c.l.b16 %v315
  %v1432 = vunpack.c.l.b16 %v316
  %v1433 = vunpack.c.l.b16 %v317
  %v1434 = vunpack.c.l.b16 %v318
  %v1435 = vunpack.c.l.b16 %v319
  %v1436 = vunpack.c.l.b16 %v320
  %v1437 = vunpack.c.l.b16 %v321
  %v1438 = vunpack.c.l.b16 %v322
  %v1439 = vunpack.c.l.b16 %v323
  %v1440 = vunpack.c.l.b16 %v324
  %v1441 = vunpack.c.l.b16 %v325
  %v1442 = vunpack.c.l.b16 %v326
  %v1443 = vunpack.c.l.b16 %v327
  %v1444 = vunpack.c.l.b16 %v328
  %v1445 = vunpack.c.l.b16 %v329
  %v1446 = vunpack.c.l.b16 %v330
  %v1447 = vunpack.c.l.b16 %v331
  %v1448 = vunpack.c.l.b16 %v332
  %v1449 = vunpack.c.l.b16 %v333
  %v1450 = vunpack.c.l.b16 %v334
  %v1451 = vunpack.c.l.b16 %v335
  %v1452 = vunpack.c.l.b16 %v336
  %v1453 = vunpack.c.l.b16 %v337
  %v1454 = vunpack.c.l.b16 %v338
  %v1455 = vunpack.c.l.b16 %v339
  %v1456 = vunpack.c.l.b16 %v340
  %v1457 = vunpack.c.l.b16 %v341
  %v1458 = vunpack.c.l.b16 %v342
  %v1459 = vunpack.c.l.b16 %v343
  %v1460 = vunpack.c.l.b16 %v344
  %v1461 = vunpack.c.l.b16 %v345
  %v1462 = vunpack.c.l.b16 %v346
  %v1463 = vunpack.c.l.b16 %v347
  %v1464 = vunpack.c.l.b16 %v348
  %v1465 = vunpack.c.l.b16 %v349
  %v1466 = vunpack.c.l.b16 %v350
  %v1467 = vunpack.c.l.b16 %v351
  %v1468 = vunpack.c.l.b16 %v352
  %v1469 = vunpack.c.l.b16 %v353
  %v1470 = vunpack.c.l.b16 %v354
  %v1471 = vunpack.c.l.b16 %v355
  %v1472 = vunpack.c.l.b16 %v356
  %v1473 = vunpack.c.l.b16 %v357
  %v1474 = vunpack.c.l.b16 %v358
  %v1475 = vunpack.c.l.b16 %v359
  %v1476 = vunpack.c.l.b16 %v360
  %v1477 = vunpack.c.l.b16 %v361
  %v1478 = vunpack.c.l.b16 %v362
  %v1479 = vunpack.c.l.b16 %v363
  %v1480 = vunpack.c.l.b16 %v364
  %v1481 = vunpack.c.l.b16 %v365
  %v1482 = vunpack.c.l.b16 %v366
  %v1483 = vunpack.c.l.b16 %v367
  %v1484 = vunpack.c.l.b16 %v368
  %v1485 = vunpack.c.l.b16 %v369
  %v1486 = vunpack.c.l.b16 %v370
  %v1487 = vunpack.c.l.b16 %v371
  %v1488 = vunpack.c.l.b16 %v372
  %v1489 = vunpack.c.l.b16 %v373
  %v1490 = vunpack.c.l.b16 %v374
  %v1491 = vunpack.c.l.b16 %v375
  %v1492 = vunpack.c.l.b16 %v376
  %v1493 = vunpack.c.l.b16 %v377
  %v1494 = vunpack.c.l.b16 %v378
  %v1495 = vunpack.c.l.b16 %v379
  %v1496 = vunpack.c.l.b16 %v380
  %v1497 = vunpack.c.l.b16 %v381
  %v1498 = vunpack.c.l.b16 %v382
  %v1499 = vunpack.c.l.b16 %v383
  %v1500 = vunpack.c.l.b16 %v384
  %v1501 = vunpack.c.l.b16 %v385
  %v1502 = vunpack.c.l.b16 %v386
  %v1503 = vunpack.c.l.b16 %v387
  %v1504 = vunpack.c.l.b16 %v388
  %v1505 = vunpack.c.l.b16 %v389
  %v1506 = vunpack.c.l.b16 %v390
  %v1507 = vunpack.c.l.b16 %v391
  %v1508 = vunpack.c.l.b16 %v392
  %v1509 = vunpack.c.l.b16 %v393
  %v1510 = vunpack.c.l.b16 %v394
  %v1511 = vunpack.c.l.b16 %v395
  %v1512 = vunpack.c.l.b16 %v396
  %v1513 = vunpack.c.l.b16 %v397
  %v1514 = vunpack.c.l.b16 %v398
  %v1515 = vunpack.c.l.b16 %v399
  %v1516 = vunpack.c.l.b16 %v400
  %v1517 = vunpack.c.l.b16 %v401
  %v1518 = vunpack.c.l.b16 %v402
  %v1519 = vunpack.c.l.b16 %v403
  %v1520 = vunpack.c.l.b16 %v404
  %v1521 = vunpack.c.l.b16 %v405
  %v1522 = vunpack.c.l.b16 %v406
  %v1523 = vunpack.c.l.b16 %v407
  %v1524 = vunpack.c.l.b16 %v408
  %v1525 = vunpack.c.l.b16 %v409
  %v1526 = vpack.c.b16 %v1239, %v1238
  %v1527 = vpack.c.b16 %v1241, %v1240
  %v1528 = vpack.c.b16 %v1243, %v1242
  %v1529 = vpack.c.b16 %v1245, %v1244
  %v1530 = vpack.c.b16 %v1247, %v1246
  %v1531 = vpack.c.b16 %v1249, %v1248
  %v1532 = vpack.c.b16 %v1251, %v1250
  %v1533 = vpack.c.b16 %v1253, %v1252
  %v1534 = vpack.c.b16 %v1255, %v1254
  %v1535 = vpack.c.b16 %v1257, %v1256
  %v1536 = vpack.c.b16 %v1259, %v1258
  %v1537 = vpack.c.b16 %v1261, %v1260
  %v1538 = vpack.c.b16 %v1263, %v1262
  %v1539 = vpack.c.b16 %v1265, %v1264
  %v1540 = vpack.c.b16 %v1267, %v1266
  %v1541 = vpack.c.b16 %v1269, %v1268
  %v1542 = vpack.c.b16 %v1271, %v1270
  %v1543 = vpack.c.b16 %v1273, %v1272
  %v1544 = vpack.c.b16 %v1275, %v1274
  %v1545 = vpack.c.b16 %v1277, %v1276
  %v1546 = vpack.c.b16 %v1279, %v1278
  %v1547 = vpack.c.b16 %v1281, %v1280
  %v1548 = vpack.c.b16 %v1283, %v1282
  %v1549 = vpack.c.b16 %v1285, %v1284
  %v1550 = vpack.c.b16 %v1287, %v1286
  %v1551 = vpack.c.b16 %v1289, %v1288
  %v1552 = vpack.c.b16 %v1291, %v1290
  %v1553 = vpack.c.b16 %v1293, %v1292
  %v1554 = vpack.c.b16 %v1295, %v1294
  %v1555 = vpack.c.b16 %v1297, %v1296
  %v1556 = vpack.c.b16 %v1299, %v1298
  %v1557 = vpack.c.b16 %v1301, %v1300
  %v1558 = vpack.c.b16 %v1303, %v1302
  %v1559 = vpack.c.b16 %v1305, %v1304
  %v1560 = vpack.c.b16 %v1307, %v1306
  %v1561 = vpack.c.b16 %v1309, %v1308
  %v1562 = vpack.c.b16 %v1311, %v1310
  %v1563 = vpack.c.b16 %v1313, %v1312
  %v1564 = vpack.c.b16 %v1315, %v1314
  %v1565 = vpack.c.b16 %v1317, %v1316
  %v1566 = vpack.c.b16 %v1319, %v1318
  %v1567 = vpack.c.b16 %v1321, %v1320
  %v1568 = vpack.c.b16 %v1323, %v1322
  %v1569 = vpack.c.b16 %v1325, %v1324
  %v1570 = vpack.c.b16 %v1327, %v1326
  %v1571 = vpack.c.b16 %v1329, %v1328
  %v1572 = vpack.c.b16 %v1331, %v1330
  %v1573 = vpack.c.b16 %v1333, %v1332
  %v1574 = vpack.c.b16 %v1335, %v1334
  %v1575 = vpack.c.b16 %v1337, %v1336
  %v1576 = vpack.c.b16 %v1339, %v1338
  %v1577 = vpack.c.b16 %v1341, %v1340
  %v1578 = vpack.c.b16 %v1343, %v1342
  %v1579 = vpack.c.b16 %v1345, %v1344
  %v1580 = vpack.c.b16 %v1347, %v1346
  %v1581 = vpack.c.b16 %v1349, %v1348
  %v1582 = vpack.c.b16 %v1351, %v1350
  %v1583 = vpack.c.b16 %v1353, %v1352
  %v1584 = vpack.c.b16 %v1355, %v1354
  %v1585 = vpack.c.b16 %v1357, %v1356
  %v1586 = vpack.c.b16 %v1359, %v1358
  %v1587 = vpack.c.b16 %v1361, %v1360
  %v1588 = vpack.c.b16 %v1363, %v1362
  %v1589 = vpack.c.b16 %v1365, %v1364
  %v1590 = vpack.c.b16 %v1367, %v1366
  %v1591 = vpack.c.b16 %v1369, %v1368
  %v1592 = vpack.c.b16 %v1371, %v1370
  %v1593 = vpack.c.b16 %v1373, %v1372
  %v1594 = vpack.c.b16 %v1375, %v1374
  %v1595 = vpack.c.b16 %v1377, %v1376
  %v1596 = vpack.c.b16 %v1379, %v1378
  %v1597 = vpack.c.b16 %v1381, %v1380
  %v1598 = vpack.c.b16 %v1383, %v1382
  %v1599 = vpack.c.b16 %v1385, %v1384
  %v1600 = vpack.c.b16 %v1387, %v1386
  %v1601 = vpack.c.b16 %v1389, %v1388
  %v1602 = vpack.c.b16 %v1391, %v1390
  %v1603 = vpack.c.b16 %v1393, %v1392
  %v1604 = vpack.c.b16 %v1395, %v1394
  %v1605 = vpack.c.b16 %v1397, %v1396
  %v1606 = vpack.c.b16 %v1399, %v1398
  %v1607 = vpack.c.b16 %v1401, %v1400
  %v1608 = vpack.c.b16 %v1403, %v1402
  %v1609 = vpack.c.b16 %v1405, %v1404
  %v1610 = vpack.c.b16 %v1407, %v1406
  %v1611 = vpack.c.b16 %v1409, %v1408
  %v1612 = vpack.c.b16 %v1411, %v1410
  %v1613 = vpack.c.b16 %v1413, %v1412
  %v1614 = vpack.c.b16 %v1415, %v1414
  %v1615 = vpack.c.b16 %v1417, %v1416
  %v1616 = vpack.c.b16 %v1419, %v1418
  %v1617 = vpack.c.b16 %v1421, %v1420
  %v1618 = vpack.c.b16 %v1423, %v1422
  %v1619 = vpack.c.b16 %v1425, %v1424
  %v1620 = vpack.c.b16 %v1427, %v1426
  %v1621 = vpack.c.b16 %v1429, %v1428
  %v1622 = vpack.c.b16 %v1431, %v1430
  %v1623 = vpack.c.b16 %v1433, %v1432
  %v1624 = vpack.c.b16 %v1435, %v1434
  %v1625 = vpack.c.b16 %v1437, %v1436
  %v1626 = vpack.c.b16 %v1439, %v1438
  %v1627 = vpack.c.b16 %v1441, %v1440
  %v1628 = vpack.c.b16 %v1443, %v1442
  %v1629 = vpack.c.b16 %v1445, %v1444
  %v1630 = vpack.c.b16 %v1447, %v1446
  %v1631 = vpack.c.b16 %v1449, %v1448
  %v1632 = vpack.c.b16 %v1451, %v1450
  %v1633 = vpack.c.b16 %v1453, %v1452
  %v1634 = vpack.c.b16 %v1455, %v1454
  %v1635 = vpack.c.b16 %v1457, %v1456
  %v1636 = vpack.c.b16 %v1459, %v1458
  %v1637 = vpack.c.b16 %v1461, %v1460
  %v1638 = vpack.c.b16 %v1463, %v1462
  %v1639 = vpack.c.b16 %v1465, %v1464
  %v1640 = vpack.c.b16 %v1467, %v1466
  %v1641 = vpack.c.b16 %v1469, %v1468
  %v1642 = vpack.c.b16 %v1471, %v1470
  %v1643 = vpack.c.b16 %v1473, %v1472
  %v1644 = vpack.c.b16 %v1475, %v1474
  %v1645 = vpack.c.b16 %v1477, %v1476
  %v1646 = vpack.c.b16 %v1479, %v1478
  %v1647 = vpack.c.b16 %v1481, %v1480
  %v1648 = vpack.c.b16 %v1483, %v1482
  %v1649 = vpack.c.b16 %v1485, %v1484
  %v1650 = vpack.c.b16 %v1487, %v1486
  %v1651 = vpack.c.b16 %v1489, %v1488
  %v1652 = vpack.c.b16 %v1491, %v1490
  %v1653 = vpack.c.b16 %v1493, %v1492
  %v1654 = vpack.c.b16 %v1495, %v1494
  %v1655 = vpack.c.b16 %v1497, %v1496
  %v1656 = vpack.c.b16 %v1499, %v1498
  %v1657 = vpack.c.b16 %v1501, %v1500
  %v1658 = vpack.c.b16 %v1503, %v1502
  %v1659 = vpack.c.b16 %v1505, %v1504
  %v1660 = vpack.c.b16 %v1507, %v1506
  %v1661 = vpack.c.b16 %v1509, %v1508
  %v1662 = vpack.c.b16 %v1511, %v1510
  %v1663 = vpack.c.b16 %v1513, %v1512
  %v1664 = vpack.c.b16 %v1515, %v1514
  %v1665 = vpack.c.b16 %v1517, %v1516
  %v1666 = vpack.c.b16 %v1519, %v1518
  %v1667 = vpack.c.b16 %v1521, %v1520
  %v1668 = vpack.c.b16 %v1523, %v1522
  %v1669 = vpack.c.b16 %v1525, %v1524
  %1814 = vmatpush.bf16.msra.mxu0 %v1533
  %1815 = vmatpush.bf16.msra.mxu0 %v1532
  %1816 = vmatpush.bf16.msra.mxu0 %v1531
  %1817 = vmatpush.bf16.msra.mxu0 %v1530
  %1818 = vmatpush.bf16.msra.mxu0 %v1529
  %1819 = vmatpush.bf16.msra.mxu0 %v1528
  %1820 = vmatpush.bf16.msra.mxu0 %v1527
  %1821 = vmatpush.bf16.msra.mxu0 %v1526
  %1822 = vmatmul.bf16.gmra.mxu0 %v734
  %v1823 = vpop.f32.mrf.mxu0
  %v1824 = vadd.f32 0.0, %v1823
  %v1825 = vpop.f32.mrf.mxu0
  %v1826 = vadd.f32 0.0, %v1825
  %1827 = vmatmul.bf16.gmra.mxu0 %v752
  %v1828 = vpop.f32.mrf.mxu0
  %v1829 = vadd.f32 0.0, %v1828
  %v1830 = vpop.f32.mrf.mxu0
  %v1831 = vadd.f32 0.0, %v1830
  %1832 = vmatmul.bf16.gmra.mxu0 %v770
  %v1833 = vpop.f32.mrf.mxu0
  %v1834 = vadd.f32 0.0, %v1833
  %v1835 = vpop.f32.mrf.mxu0
  %v1836 = vadd.f32 0.0, %v1835
  %1837 = vmatmul.bf16.gmra.mxu0 %v788
  %v1838 = vpop.f32.mrf.mxu0
  %v1839 = vadd.f32 0.0, %v1838
  %v1840 = vpop.f32.mrf.mxu0
  %v1841 = vadd.f32 0.0, %v1840
  %1842 = vmatmul.bf16.gmra.mxu0 %v806
  %v1843 = vpop.f32.mrf.mxu0
  %v1844 = vadd.f32 0.0, %v1843
  %v1845 = vpop.f32.mrf.mxu0
  %v1846 = vadd.f32 0.0, %v1845
  %1847 = vmatmul.bf16.gmra.mxu0 %v824
  %v1848 = vpop.f32.mrf.mxu0
  %v1849 = vadd.f32 0.0, %v1848
  %v1850 = vpop.f32.mrf.mxu0
  %v1851 = vadd.f32 0.0, %v1850
  %1852 = vdwg.mxu0
  %1853 = vmatpush.bf16.msra.mxu0 %v1541
  %1854 = vmatpush.bf16.msra.mxu0 %v1540
  %1855 = vmatpush.bf16.msra.mxu0 %v1539
  %1856 = vmatpush.bf16.msra.mxu0 %v1538
  %1857 = vmatpush.bf16.msra.mxu0 %v1537
  %1858 = vmatpush.bf16.msra.mxu0 %v1536
  %1859 = vmatpush.bf16.msra.mxu0 %v1535
  %1860 = vmatpush.bf16.msra.mxu0 %v1534
  %1861 = vmatmul.bf16.gmra.mxu0 %v735
  %v1862 = vpop.f32.mrf.mxu0
  %v1863 = vadd.f32 %v1824, %v1862
  %v1864 = vpop.f32.mrf.mxu0
  %v1865 = vadd.f32 %v1826, %v1864
  %1866 = vmatmul.bf16.gmra.mxu0 %v753
  %v1867 = vpop.f32.mrf.mxu0
  %v1868 = vadd.f32 %v1829, %v1867
  %v1869 = vpop.f32.mrf.mxu0
  %v1870 = vadd.f32 %v1831, %v1869
  %1871 = vmatmul.bf16.gmra.mxu0 %v771
  %v1872 = vpop.f32.mrf.mxu0
  %v1873 = vadd.f32 %v1834, %v1872
  %v1874 = vpop.f32.mrf.mxu0
  %v1875 = vadd.f32 %v1836, %v1874
  %1876 = vmatmul.bf16.gmra.mxu0 %v789
  %v1877 = vpop.f32.mrf.mxu0
  %v1878 = vadd.f32 %v1839, %v1877
  %v1879 = vpop.f32.mrf.mxu0
  %v1880 = vadd.f32 %v1841, %v1879
  %1881 = vmatmul.bf16.gmra.mxu0 %v807
  %v1882 = vpop.f32.mrf.mxu0
  %v1883 = vadd.f32 %v1844, %v1882
  %v1884 = vpop.f32.mrf.mxu0
  %v1885 = vadd.f32 %v1846, %v1884
  %1886 = vmatmul.bf16.gmra.mxu0 %v825
  %v1887 = vpop.f32.mrf.mxu0
  %v1888 = vadd.f32 %v1849, %v1887
  %v1889 = vpop.f32.mrf.mxu0
  %v1890 = vadd.f32 %v1851, %v1889
  %1891 = vdwg.mxu0
  %1892 = vmatpush.bf16.msra.mxu0 %v1549
  %1893 = vmatpush.bf16.msra.mxu0 %v1548
  %1894 = vmatpush.bf16.msra.mxu0 %v1547
  %1895 = vmatpush.bf16.msra.mxu0 %v1546
  %1896 = vmatpush.bf16.msra.mxu0 %v1545
  %1897 = vmatpush.bf16.msra.mxu0 %v1544
  %1898 = vmatpush.bf16.msra.mxu0 %v1543
  %1899 = vmatpush.bf16.msra.mxu0 %v1542
  %1900 = vmatmul.bf16.gmra.mxu0 %v736
  %v1901 = vpop.f32.mrf.mxu0
  %v1902 = vadd.f32 %v1863, %v1901
  %v1903 = vpop.f32.mrf.mxu0
  %v1904 = vadd.f32 %v1865, %v1903
  %1905 = vmatmul.bf16.gmra.mxu0 %v754
  %v1906 = vpop.f32.mrf.mxu0
  %v1907 = vadd.f32 %v1868, %v1906
  %v1908 = vpop.f32.mrf.mxu0
  %v1909 = vadd.f32 %v1870, %v1908
  %1910 = vmatmul.bf16.gmra.mxu0 %v772
  %v1911 = vpop.f32.mrf.mxu0
  %v1912 = vadd.f32 %v1873, %v1911
  %v1913 = vpop.f32.mrf.mxu0
  %v1914 = vadd.f32 %v1875, %v1913
  %1915 = vmatmul.bf16.gmra.mxu0 %v790
  %v1916 = vpop.f32.mrf.mxu0
  %v1917 = vadd.f32 %v1878, %v1916
  %v1918 = vpop.f32.mrf.mxu0
  %v1919 = vadd.f32 %v1880, %v1918
  %1920 = vmatmul.bf16.gmra.mxu0 %v808
  %v1921 = vpop.f32.mrf.mxu0
  %v1922 = vadd.f32 %v1883, %v1921
  %v1923 = vpop.f32.mrf.mxu0
  %v1924 = vadd.f32 %v1885, %v1923
  %1925 = vmatmul.bf16.gmra.mxu0 %v826
  %v1926 = vpop.f32.mrf.mxu0
  %v1927 = vadd.f32 %v1888, %v1926
  %v1928 = vpop.f32.mrf.mxu0
  %v1929 = vadd.f32 %v1890, %v1928
  %1930 = vdwg.mxu0
  %1931 = vmatpush.bf16.msra.mxu0 %v1557
  %1932 = vmatpush.bf16.msra.mxu0 %v1556
  %1933 = vmatpush.bf16.msra.mxu0 %v1555
  %1934 = vmatpush.bf16.msra.mxu0 %v1554
  %1935 = vmatpush.bf16.msra.mxu0 %v1553
  %1936 = vmatpush.bf16.msra.mxu0 %v1552
  %1937 = vmatpush.bf16.msra.mxu0 %v1551
  %1938 = vmatpush.bf16.msra.mxu0 %v1550
  %1939 = vmatmul.bf16.gmra.mxu0 %v737
  %v1940 = vpop.f32.mrf.mxu0
  %v1941 = vadd.f32 %v1902, %v1940
  %v1942 = vpop.f32.mrf.mxu0
  %v1943 = vadd.f32 %v1904, %v1942
  %1944 = vmatmul.bf16.gmra.mxu0 %v755
  %v1945 = vpop.f32.mrf.mxu0
  %v1946 = vadd.f32 %v1907, %v1945
  %v1947 = vpop.f32.mrf.mxu0
  %v1948 = vadd.f32 %v1909, %v1947
  %1949 = vmatmul.bf16.gmra.mxu0 %v773
  %v1950 = vpop.f32.mrf.mxu0
  %v1951 = vadd.f32 %v1912, %v1950
  %v1952 = vpop.f32.mrf.mxu0
  %v1953 = vadd.f32 %v1914, %v1952
  %1954 = vmatmul.bf16.gmra.mxu0 %v791
  %v1955 = vpop.f32.mrf.mxu0
  %v1956 = vadd.f32 %v1917, %v1955
  %v1957 = vpop.f32.mrf.mxu0
  %v1958 = vadd.f32 %v1919, %v1957
  %1959 = vmatmul.bf16.gmra.mxu0 %v809
  %v1960 = vpop.f32.mrf.mxu0
  %v1961 = vadd.f32 %v1922, %v1960
  %v1962 = vpop.f32.mrf.mxu0
  %v1963 = vadd.f32 %v1924, %v1962
  %1964 = vmatmul.bf16.gmra.mxu0 %v827
  %v1965 = vpop.f32.mrf.mxu0
  %v1966 = vadd.f32 %v1927, %v1965
  %v1967 = vpop.f32.mrf.mxu0
  %v1968 = vadd.f32 %v1929, %v1967
  %1969 = vdwg.mxu0
  %1970 = vmatpush.bf16.msra.mxu0 %v1565
  %1971 = vmatpush.bf16.msra.mxu0 %v1564
  %1972 = vmatpush.bf16.msra.mxu0 %v1563
  %1973 = vmatpush.bf16.msra.mxu0 %v1562
  %1974 = vmatpush.bf16.msra.mxu0 %v1561
  %1975 = vmatpush.bf16.msra.mxu0 %v1560
  %1976 = vmatpush.bf16.msra.mxu0 %v1559
  %1977 = vmatpush.bf16.msra.mxu0 %v1558
  %1978 = vmatmul.bf16.gmra.mxu0 %v738
  %v1979 = vpop.f32.mrf.mxu0
  %v1980 = vadd.f32 %v1941, %v1979
  %v1981 = vpop.f32.mrf.mxu0
  %v1982 = vadd.f32 %v1943, %v1981
  %1983 = vmatmul.bf16.gmra.mxu0 %v756
  %v1984 = vpop.f32.mrf.mxu0
  %v1985 = vadd.f32 %v1946, %v1984
  %v1986 = vpop.f32.mrf.mxu0
  %v1987 = vadd.f32 %v1948, %v1986
  %1988 = vmatmul.bf16.gmra.mxu0 %v774
  %v1989 = vpop.f32.mrf.mxu0
  %v1990 = vadd.f32 %v1951, %v1989
  %v1991 = vpop.f32.mrf.mxu0
  %v1992 = vadd.f32 %v1953, %v1991
  %1993 = vmatmul.bf16.gmra.mxu0 %v792
  %v1994 = vpop.f32.mrf.mxu0
  %v1995 = vadd.f32 %v1956, %v1994
  %v1996 = vpop.f32.mrf.mxu0
  %v1997 = vadd.f32 %v1958, %v1996
  %1998 = vmatmul.bf16.gmra.mxu0 %v810
  %v1999 = vpop.f32.mrf.mxu0
  %v2000 = vadd.f32 %v1961, %v1999
  %v2001 = vpop.f32.mrf.mxu0
  %v2002 = vadd.f32 %v1963, %v2001
  %2003 = vmatmul.bf16.gmra.mxu0 %v828
  %v2004 = vpop.f32.mrf.mxu0
  %v2005 = vadd.f32 %v1966, %v2004
  %v2006 = vpop.f32.mrf.mxu0
  %v2007 = vadd.f32 %v1968, %v2006
  %2008 = vdwg.mxu0
  %2009 = vmatpush.bf16.msra.mxu0 %v1573
  %2010 = vmatpush.bf16.msra.mxu0 %v1572
  %2011 = vmatpush.bf16.msra.mxu0 %v1571
  %2012 = vmatpush.bf16.msra.mxu0 %v1570
  %2013 = vmatpush.bf16.msra.mxu0 %v1569
  %2014 = vmatpush.bf16.msra.mxu0 %v1568
  %2015 = vmatpush.bf16.msra.mxu0 %v1567
  %2016 = vmatpush.bf16.msra.mxu0 %v1566
  %2017 = vmatmul.bf16.gmra.mxu0 %v739
  %v2018 = vpop.f32.mrf.mxu0
  %v2019 = vadd.f32 %v1980, %v2018
  %v2020 = vpop.f32.mrf.mxu0
  %v2021 = vadd.f32 %v1982, %v2020
  %2022 = vmatmul.bf16.gmra.mxu0 %v757
  %v2023 = vpop.f32.mrf.mxu0
  %v2024 = vadd.f32 %v1985, %v2023
  %v2025 = vpop.f32.mrf.mxu0
  %v2026 = vadd.f32 %v1987, %v2025
  %2027 = vmatmul.bf16.gmra.mxu0 %v775
  %v2028 = vpop.f32.mrf.mxu0
  %v2029 = vadd.f32 %v1990, %v2028
  %v2030 = vpop.f32.mrf.mxu0
  %v2031 = vadd.f32 %v1992, %v2030
  %2032 = vmatmul.bf16.gmra.mxu0 %v793
  %v2033 = vpop.f32.mrf.mxu0
  %v2034 = vadd.f32 %v1995, %v2033
  %v2035 = vpop.f32.mrf.mxu0
  %v2036 = vadd.f32 %v1997, %v2035
  %2037 = vmatmul.bf16.gmra.mxu0 %v811
  %v2038 = vpop.f32.mrf.mxu0
  %v2039 = vadd.f32 %v2000, %v2038
  %v2040 = vpop.f32.mrf.mxu0
  %v2041 = vadd.f32 %v2002, %v2040
  %2042 = vmatmul.bf16.gmra.mxu0 %v829
  %v2043 = vpop.f32.mrf.mxu0
  %v2044 = vadd.f32 %v2005, %v2043
  %v2045 = vpop.f32.mrf.mxu0
  %v2046 = vadd.f32 %v2007, %v2045
  %2047 = vdwg.mxu0
  %2048 = vmatpush.bf16.msra.mxu0 %v1581
  %2049 = vmatpush.bf16.msra.mxu0 %v1580
  %2050 = vmatpush.bf16.msra.mxu0 %v1579
  %2051 = vmatpush.bf16.msra.mxu0 %v1578
  %2052 = vmatpush.bf16.msra.mxu0 %v1577
  %2053 = vmatpush.bf16.msra.mxu0 %v1576
  %2054 = vmatpush.bf16.msra.mxu0 %v1575
  %2055 = vmatpush.bf16.msra.mxu0 %v1574
  %2056 = vmatmul.bf16.gmra.mxu0 %v740
  %v2057 = vpop.f32.mrf.mxu0
  %v2058 = vadd.f32 %v2019, %v2057
  %v2059 = vpop.f32.mrf.mxu0
  %v2060 = vadd.f32 %v2021, %v2059
  %2061 = vmatmul.bf16.gmra.mxu0 %v758
  %v2062 = vpop.f32.mrf.mxu0
  %v2063 = vadd.f32 %v2024, %v2062
  %v2064 = vpop.f32.mrf.mxu0
  %v2065 = vadd.f32 %v2026, %v2064
  %2066 = vmatmul.bf16.gmra.mxu0 %v776
  %v2067 = vpop.f32.mrf.mxu0
  %v2068 = vadd.f32 %v2029, %v2067
  %v2069 = vpop.f32.mrf.mxu0
  %v2070 = vadd.f32 %v2031, %v2069
  %2071 = vmatmul.bf16.gmra.mxu0 %v794
  %v2072 = vpop.f32.mrf.mxu0
  %v2073 = vadd.f32 %v2034, %v2072
  %v2074 = vpop.f32.mrf.mxu0
  %v2075 = vadd.f32 %v2036, %v2074
  %2076 = vmatmul.bf16.gmra.mxu0 %v812
  %v2077 = vpop.f32.mrf.mxu0
  %v2078 = vadd.f32 %v2039, %v2077
  %v2079 = vpop.f32.mrf.mxu0
  %v2080 = vadd.f32 %v2041, %v2079
  %2081 = vmatmul.bf16.gmra.mxu0 %v830
  %v2082 = vpop.f32.mrf.mxu0
  %v2083 = vadd.f32 %v2044, %v2082
  %v2084 = vpop.f32.mrf.mxu0
  %v2085 = vadd.f32 %v2046, %v2084
  %2086 = vdwg.mxu0
  %2087 = vmatpush.bf16.msra.mxu0 %v1589
  %2088 = vmatpush.bf16.msra.mxu0 %v1588
  %2089 = vmatpush.bf16.msra.mxu0 %v1587
  %2090 = vmatpush.bf16.msra.mxu0 %v1586
  %2091 = vmatpush.bf16.msra.mxu0 %v1585
  %2092 = vmatpush.bf16.msra.mxu0 %v1584
  %2093 = vmatpush.bf16.msra.mxu0 %v1583
  %2094 = vmatpush.bf16.msra.mxu0 %v1582
  %2095 = vmatmul.bf16.gmra.mxu0 %v741
  %v2096 = vpop.f32.mrf.mxu0
  %v2097 = vadd.f32 %v2058, %v2096
  %v2098 = vpop.f32.mrf.mxu0
  %v2099 = vadd.f32 %v2060, %v2098
  %2100 = vmatmul.bf16.gmra.mxu0 %v759
  %v2101 = vpop.f32.mrf.mxu0
  %v2102 = vadd.f32 %v2063, %v2101
  %v2103 = vpop.f32.mrf.mxu0
  %v2104 = vadd.f32 %v2065, %v2103
  %2105 = vmatmul.bf16.gmra.mxu0 %v777
  %v2106 = vpop.f32.mrf.mxu0
  %v2107 = vadd.f32 %v2068, %v2106
  %v2108 = vpop.f32.mrf.mxu0
  %v2109 = vadd.f32 %v2070, %v2108
  %2110 = vmatmul.bf16.gmra.mxu0 %v795
  %v2111 = vpop.f32.mrf.mxu0
  %v2112 = vadd.f32 %v2073, %v2111
  %v2113 = vpop.f32.mrf.mxu0
  %v2114 = vadd.f32 %v2075, %v2113
  %2115 = vmatmul.bf16.gmra.mxu0 %v813
  %v2116 = vpop.f32.mrf.mxu0
  %v2117 = vadd.f32 %v2078, %v2116
  %v2118 = vpop.f32.mrf.mxu0
  %v2119 = vadd.f32 %v2080, %v2118
  %2120 = vmatmul.bf16.gmra.mxu0 %v831
  %v2121 = vpop.f32.mrf.mxu0
  %v2122 = vadd.f32 %v2083, %v2121
  %v2123 = vpop.f32.mrf.mxu0
  %v2124 = vadd.f32 %v2085, %v2123
  %2125 = vdwg.mxu0
  %2126 = vmatpush.bf16.msra.mxu0 %v1597
  %2127 = vmatpush.bf16.msra.mxu0 %v1596
  %2128 = vmatpush.bf16.msra.mxu0 %v1595
  %2129 = vmatpush.bf16.msra.mxu0 %v1594
  %2130 = vmatpush.bf16.msra.mxu0 %v1593
  %2131 = vmatpush.bf16.msra.mxu0 %v1592
  %2132 = vmatpush.bf16.msra.mxu0 %v1591
  %2133 = vmatpush.bf16.msra.mxu0 %v1590
  %2134 = vmatmul.bf16.gmra.mxu0 %v742
  %v2135 = vpop.f32.mrf.mxu0
  %v2136 = vadd.f32 %v2097, %v2135
  %v2137 = vpop.f32.mrf.mxu0
  %v2138 = vadd.f32 %v2099, %v2137
  %2139 = vmatmul.bf16.gmra.mxu0 %v760
  %v2140 = vpop.f32.mrf.mxu0
  %v2141 = vadd.f32 %v2102, %v2140
  %v2142 = vpop.f32.mrf.mxu0
  %v2143 = vadd.f32 %v2104, %v2142
  %2144 = vmatmul.bf16.gmra.mxu0 %v778
  %v2145 = vpop.f32.mrf.mxu0
  %v2146 = vadd.f32 %v2107, %v2145
  %v2147 = vpop.f32.mrf.mxu0
  %v2148 = vadd.f32 %v2109, %v2147
  %2149 = vmatmul.bf16.gmra.mxu0 %v796
  %v2150 = vpop.f32.mrf.mxu0
  %v2151 = vadd.f32 %v2112, %v2150
  %v2152 = vpop.f32.mrf.mxu0
  %v2153 = vadd.f32 %v2114, %v2152
  %2154 = vmatmul.bf16.gmra.mxu0 %v814
  %v2155 = vpop.f32.mrf.mxu0
  %v2156 = vadd.f32 %v2117, %v2155
  %v2157 = vpop.f32.mrf.mxu0
  %v2158 = vadd.f32 %v2119, %v2157
  %2159 = vmatmul.bf16.gmra.mxu0 %v832
  %v2160 = vpop.f32.mrf.mxu0
  %v2161 = vadd.f32 %v2122, %v2160
  %v2162 = vpop.f32.mrf.mxu0
  %v2163 = vadd.f32 %v2124, %v2162
  %2164 = vdwg.mxu0
  %2165 = vmatpush.bf16.msra.mxu0 %v1605
  %2166 = vmatpush.bf16.msra.mxu0 %v1604
  %2167 = vmatpush.bf16.msra.mxu0 %v1603
  %2168 = vmatpush.bf16.msra.mxu0 %v1602
  %2169 = vmatpush.bf16.msra.mxu0 %v1601
  %2170 = vmatpush.bf16.msra.mxu0 %v1600
  %2171 = vmatpush.bf16.msra.mxu0 %v1599
  %2172 = vmatpush.bf16.msra.mxu0 %v1598
  %2173 = vmatmul.bf16.gmra.mxu0 %v743
  %v2174 = vpop.f32.mrf.mxu0
  %v2175 = vadd.f32 %v2136, %v2174
  %v2176 = vpop.f32.mrf.mxu0
  %v2177 = vadd.f32 %v2138, %v2176
  %2178 = vmatmul.bf16.gmra.mxu0 %v761
  %v2179 = vpop.f32.mrf.mxu0
  %v2180 = vadd.f32 %v2141, %v2179
  %v2181 = vpop.f32.mrf.mxu0
  %v2182 = vadd.f32 %v2143, %v2181
  %2183 = vmatmul.bf16.gmra.mxu0 %v779
  %v2184 = vpop.f32.mrf.mxu0
  %v2185 = vadd.f32 %v2146, %v2184
  %v2186 = vpop.f32.mrf.mxu0
  %v2187 = vadd.f32 %v2148, %v2186
  %2188 = vmatmul.bf16.gmra.mxu0 %v797
  %v2189 = vpop.f32.mrf.mxu0
  %v2190 = vadd.f32 %v2151, %v2189
  %v2191 = vpop.f32.mrf.mxu0
  %v2192 = vadd.f32 %v2153, %v2191
  %2193 = vmatmul.bf16.gmra.mxu0 %v815
  %v2194 = vpop.f32.mrf.mxu0
  %v2195 = vadd.f32 %v2156, %v2194
  %v2196 = vpop.f32.mrf.mxu0
  %v2197 = vadd.f32 %v2158, %v2196
  %2198 = vmatmul.bf16.gmra.mxu0 %v833
  %v2199 = vpop.f32.mrf.mxu0
  %v2200 = vadd.f32 %v2161, %v2199
  %v2201 = vpop.f32.mrf.mxu0
  %v2202 = vadd.f32 %v2163, %v2201
  %2203 = vdwg.mxu0
  %2204 = vmatpush.bf16.msra.mxu0 %v1613
  %2205 = vmatpush.bf16.msra.mxu0 %v1612
  %2206 = vmatpush.bf16.msra.mxu0 %v1611
  %2207 = vmatpush.bf16.msra.mxu0 %v1610
  %2208 = vmatpush.bf16.msra.mxu0 %v1609
  %2209 = vmatpush.bf16.msra.mxu0 %v1608
  %2210 = vmatpush.bf16.msra.mxu0 %v1607
  %2211 = vmatpush.bf16.msra.mxu0 %v1606
  %2212 = vmatmul.bf16.gmra.mxu0 %v744
  %v2213 = vpop.f32.mrf.mxu0
  %v2214 = vadd.f32 %v2175, %v2213
  %v2215 = vpop.f32.mrf.mxu0
  %v2216 = vadd.f32 %v2177, %v2215
  %2217 = vmatmul.bf16.gmra.mxu0 %v762
  %v2218 = vpop.f32.mrf.mxu0
  %v2219 = vadd.f32 %v2180, %v2218
  %v2220 = vpop.f32.mrf.mxu0
  %v2221 = vadd.f32 %v2182, %v2220
  %2222 = vmatmul.bf16.gmra.mxu0 %v780
  %v2223 = vpop.f32.mrf.mxu0
  %v2224 = vadd.f32 %v2185, %v2223
  %v2225 = vpop.f32.mrf.mxu0
  %v2226 = vadd.f32 %v2187, %v2225
  %2227 = vmatmul.bf16.gmra.mxu0 %v798
  %v2228 = vpop.f32.mrf.mxu0
  %v2229 = vadd.f32 %v2190, %v2228
  %v2230 = vpop.f32.mrf.mxu0
  %v2231 = vadd.f32 %v2192, %v2230
  %2232 = vmatmul.bf16.gmra.mxu0 %v816
  %v2233 = vpop.f32.mrf.mxu0
  %v2234 = vadd.f32 %v2195, %v2233
  %v2235 = vpop.f32.mrf.mxu0
  %v2236 = vadd.f32 %v2197, %v2235
  %2237 = vmatmul.bf16.gmra.mxu0 %v834
  %v2238 = vpop.f32.mrf.mxu0
  %v2239 = vadd.f32 %v2200, %v2238
  %v2240 = vpop.f32.mrf.mxu0
  %v2241 = vadd.f32 %v2202, %v2240
  %2242 = vdwg.mxu0
  %2243 = vmatpush.bf16.msra.mxu0 %v1621
  %2244 = vmatpush.bf16.msra.mxu0 %v1620
  %2245 = vmatpush.bf16.msra.mxu0 %v1619
  %2246 = vmatpush.bf16.msra.mxu0 %v1618
  %2247 = vmatpush.bf16.msra.mxu0 %v1617
  %2248 = vmatpush.bf16.msra.mxu0 %v1616
  %2249 = vmatpush.bf16.msra.mxu0 %v1615
  %2250 = vmatpush.bf16.msra.mxu0 %v1614
  %2251 = vmatmul.bf16.gmra.mxu0 %v745
  %v2252 = vpop.f32.mrf.mxu0
  %v2253 = vadd.f32 %v2214, %v2252
  %v2254 = vpop.f32.mrf.mxu0
  %v2255 = vadd.f32 %v2216, %v2254
  %2256 = vmatmul.bf16.gmra.mxu0 %v763
  %v2257 = vpop.f32.mrf.mxu0
  %v2258 = vadd.f32 %v2219, %v2257
  %v2259 = vpop.f32.mrf.mxu0
  %v2260 = vadd.f32 %v2221, %v2259
  %2261 = vmatmul.bf16.gmra.mxu0 %v781
  %v2262 = vpop.f32.mrf.mxu0
  %v2263 = vadd.f32 %v2224, %v2262
  %v2264 = vpop.f32.mrf.mxu0
  %v2265 = vadd.f32 %v2226, %v2264
  %2266 = vmatmul.bf16.gmra.mxu0 %v799
  %v2267 = vpop.f32.mrf.mxu0
  %v2268 = vadd.f32 %v2229, %v2267
  %v2269 = vpop.f32.mrf.mxu0
  %v2270 = vadd.f32 %v2231, %v2269
  %2271 = vmatmul.bf16.gmra.mxu0 %v817
  %v2272 = vpop.f32.mrf.mxu0
  %v2273 = vadd.f32 %v2234, %v2272
  %v2274 = vpop.f32.mrf.mxu0
  %v2275 = vadd.f32 %v2236, %v2274
  %2276 = vmatmul.bf16.gmra.mxu0 %v835
  %v2277 = vpop.f32.mrf.mxu0
  %v2278 = vadd.f32 %v2239, %v2277
  %v2279 = vpop.f32.mrf.mxu0
  %v2280 = vadd.f32 %v2241, %v2279
  %2281 = vdwg.mxu0
  %2282 = vmatpush.bf16.msra.mxu0 %v1629
  %2283 = vmatpush.bf16.msra.mxu0 %v1628
  %2284 = vmatpush.bf16.msra.mxu0 %v1627
  %2285 = vmatpush.bf16.msra.mxu0 %v1626
  %2286 = vmatpush.bf16.msra.mxu0 %v1625
  %2287 = vmatpush.bf16.msra.mxu0 %v1624
  %2288 = vmatpush.bf16.msra.mxu0 %v1623
  %2289 = vmatpush.bf16.msra.mxu0 %v1622
  %2290 = vmatmul.bf16.gmra.mxu0 %v746
  %v2291 = vpop.f32.mrf.mxu0
  %v2292 = vadd.f32 %v2253, %v2291
  %v2293 = vpop.f32.mrf.mxu0
  %v2294 = vadd.f32 %v2255, %v2293
  %2295 = vmatmul.bf16.gmra.mxu0 %v764
  %v2296 = vpop.f32.mrf.mxu0
  %v2297 = vadd.f32 %v2258, %v2296
  %v2298 = vpop.f32.mrf.mxu0
  %v2299 = vadd.f32 %v2260, %v2298
  %2300 = vmatmul.bf16.gmra.mxu0 %v782
  %v2301 = vpop.f32.mrf.mxu0
  %v2302 = vadd.f32 %v2263, %v2301
  %v2303 = vpop.f32.mrf.mxu0
  %v2304 = vadd.f32 %v2265, %v2303
  %2305 = vmatmul.bf16.gmra.mxu0 %v800
  %v2306 = vpop.f32.mrf.mxu0
  %v2307 = vadd.f32 %v2268, %v2306
  %v2308 = vpop.f32.mrf.mxu0
  %v2309 = vadd.f32 %v2270, %v2308
  %2310 = vmatmul.bf16.gmra.mxu0 %v818
  %v2311 = vpop.f32.mrf.mxu0
  %v2312 = vadd.f32 %v2273, %v2311
  %v2313 = vpop.f32.mrf.mxu0
  %v2314 = vadd.f32 %v2275, %v2313
  %2315 = vmatmul.bf16.gmra.mxu0 %v836
  %v2316 = vpop.f32.mrf.mxu0
  %v2317 = vadd.f32 %v2278, %v2316
  %v2318 = vpop.f32.mrf.mxu0
  %v2319 = vadd.f32 %v2280, %v2318
  %2320 = vdwg.mxu0
  %2321 = vmatpush.bf16.msra.mxu0 %v1637
  %2322 = vmatpush.bf16.msra.mxu0 %v1636
  %2323 = vmatpush.bf16.msra.mxu0 %v1635
  %2324 = vmatpush.bf16.msra.mxu0 %v1634
  %2325 = vmatpush.bf16.msra.mxu0 %v1633
  %2326 = vmatpush.bf16.msra.mxu0 %v1632
  %2327 = vmatpush.bf16.msra.mxu0 %v1631
  %2328 = vmatpush.bf16.msra.mxu0 %v1630
  %2329 = vmatmul.bf16.gmra.mxu0 %v747
  %v2330 = vpop.f32.mrf.mxu0
  %v2331 = vadd.f32 %v2292, %v2330
  %v2332 = vpop.f32.mrf.mxu0
  %v2333 = vadd.f32 %v2294, %v2332
  %2334 = vmatmul.bf16.gmra.mxu0 %v765
  %v2335 = vpop.f32.mrf.mxu0
  %v2336 = vadd.f32 %v2297, %v2335
  %v2337 = vpop.f32.mrf.mxu0
  %v2338 = vadd.f32 %v2299, %v2337
  %2339 = vmatmul.bf16.gmra.mxu0 %v783
  %v2340 = vpop.f32.mrf.mxu0
  %v2341 = vadd.f32 %v2302, %v2340
  %v2342 = vpop.f32.mrf.mxu0
  %v2343 = vadd.f32 %v2304, %v2342
  %2344 = vmatmul.bf16.gmra.mxu0 %v801
  %v2345 = vpop.f32.mrf.mxu0
  %v2346 = vadd.f32 %v2307, %v2345
  %v2347 = vpop.f32.mrf.mxu0
  %v2348 = vadd.f32 %v2309, %v2347
  %2349 = vmatmul.bf16.gmra.mxu0 %v819
  %v2350 = vpop.f32.mrf.mxu0
  %v2351 = vadd.f32 %v2312, %v2350
  %v2352 = vpop.f32.mrf.mxu0
  %v2353 = vadd.f32 %v2314, %v2352
  %2354 = vmatmul.bf16.gmra.mxu0 %v837
  %v2355 = vpop.f32.mrf.mxu0
  %v2356 = vadd.f32 %v2317, %v2355
  %v2357 = vpop.f32.mrf.mxu0
  %v2358 = vadd.f32 %v2319, %v2357
  %2359 = vdwg.mxu0
  %2360 = vmatpush.bf16.msra.mxu0 %v1645
  %2361 = vmatpush.bf16.msra.mxu0 %v1644
  %2362 = vmatpush.bf16.msra.mxu0 %v1643
  %2363 = vmatpush.bf16.msra.mxu0 %v1642
  %2364 = vmatpush.bf16.msra.mxu0 %v1641
  %2365 = vmatpush.bf16.msra.mxu0 %v1640
  %2366 = vmatpush.bf16.msra.mxu0 %v1639
  %2367 = vmatpush.bf16.msra.mxu0 %v1638
  %2368 = vmatmul.bf16.gmra.mxu0 %v748
  %v2369 = vpop.f32.mrf.mxu0
  %v2370 = vadd.f32 %v2331, %v2369
  %v2371 = vpop.f32.mrf.mxu0
  %v2372 = vadd.f32 %v2333, %v2371
  %2373 = vmatmul.bf16.gmra.mxu0 %v766
  %v2374 = vpop.f32.mrf.mxu0
  %v2375 = vadd.f32 %v2336, %v2374
  %v2376 = vpop.f32.mrf.mxu0
  %v2377 = vadd.f32 %v2338, %v2376
  %2378 = vmatmul.bf16.gmra.mxu0 %v784
  %v2379 = vpop.f32.mrf.mxu0
  %v2380 = vadd.f32 %v2341, %v2379
  %v2381 = vpop.f32.mrf.mxu0
  %v2382 = vadd.f32 %v2343, %v2381
  %2383 = vmatmul.bf16.gmra.mxu0 %v802
  %v2384 = vpop.f32.mrf.mxu0
  %v2385 = vadd.f32 %v2346, %v2384
  %v2386 = vpop.f32.mrf.mxu0
  %v2387 = vadd.f32 %v2348, %v2386
  %2388 = vmatmul.bf16.gmra.mxu0 %v820
  %v2389 = vpop.f32.mrf.mxu0
  %v2390 = vadd.f32 %v2351, %v2389
  %v2391 = vpop.f32.mrf.mxu0
  %v2392 = vadd.f32 %v2353, %v2391
  %2393 = vmatmul.bf16.gmra.mxu0 %v838
  %v2394 = vpop.f32.mrf.mxu0
  %v2395 = vadd.f32 %v2356, %v2394
  %v2396 = vpop.f32.mrf.mxu0
  %v2397 = vadd.f32 %v2358, %v2396
  %2398 = vdwg.mxu0
  %2399 = vmatpush.bf16.msra.mxu0 %v1653
  %2400 = vmatpush.bf16.msra.mxu0 %v1652
  %2401 = vmatpush.bf16.msra.mxu0 %v1651
  %2402 = vmatpush.bf16.msra.mxu0 %v1650
  %2403 = vmatpush.bf16.msra.mxu0 %v1649
  %2404 = vmatpush.bf16.msra.mxu0 %v1648
  %2405 = vmatpush.bf16.msra.mxu0 %v1647
  %2406 = vmatpush.bf16.msra.mxu0 %v1646
  %2407 = vmatmul.bf16.gmra.mxu0 %v749
  %v2408 = vpop.f32.mrf.mxu0
  %v2409 = vadd.f32 %v2370, %v2408
  %v2410 = vpop.f32.mrf.mxu0
  %v2411 = vadd.f32 %v2372, %v2410
  %2412 = vmatmul.bf16.gmra.mxu0 %v767
  %v2413 = vpop.f32.mrf.mxu0
  %v2414 = vadd.f32 %v2375, %v2413
  %v2415 = vpop.f32.mrf.mxu0
  %v2416 = vadd.f32 %v2377, %v2415
  %2417 = vmatmul.bf16.gmra.mxu0 %v785
  %v2418 = vpop.f32.mrf.mxu0
  %v2419 = vadd.f32 %v2380, %v2418
  %v2420 = vpop.f32.mrf.mxu0
  %v2421 = vadd.f32 %v2382, %v2420
  %2422 = vmatmul.bf16.gmra.mxu0 %v803
  %v2423 = vpop.f32.mrf.mxu0
  %v2424 = vadd.f32 %v2385, %v2423
  %v2425 = vpop.f32.mrf.mxu0
  %v2426 = vadd.f32 %v2387, %v2425
  %2427 = vmatmul.bf16.gmra.mxu0 %v821
  %v2428 = vpop.f32.mrf.mxu0
  %v2429 = vadd.f32 %v2390, %v2428
  %v2430 = vpop.f32.mrf.mxu0
  %v2431 = vadd.f32 %v2392, %v2430
  %2432 = vmatmul.bf16.gmra.mxu0 %v839
  %v2433 = vpop.f32.mrf.mxu0
  %v2434 = vadd.f32 %v2395, %v2433
  %v2435 = vpop.f32.mrf.mxu0
  %v2436 = vadd.f32 %v2397, %v2435
  %2437 = vdwg.mxu0
  %2438 = vmatpush.bf16.msra.mxu0 %v1661
  %2439 = vmatpush.bf16.msra.mxu0 %v1660
  %2440 = vmatpush.bf16.msra.mxu0 %v1659
  %2441 = vmatpush.bf16.msra.mxu0 %v1658
  %2442 = vmatpush.bf16.msra.mxu0 %v1657
  %2443 = vmatpush.bf16.msra.mxu0 %v1656
  %2444 = vmatpush.bf16.msra.mxu0 %v1655
  %2445 = vmatpush.bf16.msra.mxu0 %v1654
  %2446 = vmatmul.bf16.gmra.mxu0 %v750
  %v2447 = vpop.f32.mrf.mxu0
  %v2448 = vadd.f32 %v2409, %v2447
  %v2449 = vpop.f32.mrf.mxu0
  %v2450 = vadd.f32 %v2411, %v2449
  %2451 = vmatmul.bf16.gmra.mxu0 %v768
  %v2452 = vpop.f32.mrf.mxu0
  %v2453 = vadd.f32 %v2414, %v2452
  %v2454 = vpop.f32.mrf.mxu0
  %v2455 = vadd.f32 %v2416, %v2454
  %2456 = vmatmul.bf16.gmra.mxu0 %v786
  %v2457 = vpop.f32.mrf.mxu0
  %v2458 = vadd.f32 %v2419, %v2457
  %v2459 = vpop.f32.mrf.mxu0
  %v2460 = vadd.f32 %v2421, %v2459
  %2461 = vmatmul.bf16.gmra.mxu0 %v804
  %v2462 = vpop.f32.mrf.mxu0
  %v2463 = vadd.f32 %v2424, %v2462
  %v2464 = vpop.f32.mrf.mxu0
  %v2465 = vadd.f32 %v2426, %v2464
  %2466 = vmatmul.bf16.gmra.mxu0 %v822
  %v2467 = vpop.f32.mrf.mxu0
  %v2468 = vadd.f32 %v2429, %v2467
  %v2469 = vpop.f32.mrf.mxu0
  %v2470 = vadd.f32 %v2431, %v2469
  %2471 = vmatmul.bf16.gmra.mxu0 %v840
  %v2472 = vpop.f32.mrf.mxu0
  %v2473 = vadd.f32 %v2434, %v2472
  %v2474 = vpop.f32.mrf.mxu0
  %v2475 = vadd.f32 %v2436, %v2474
  %2476 = vdwg.mxu0
  %2477 = vmatpush.bf16.msra.mxu0 %v1669
  %2478 = vmatpush.bf16.msra.mxu0 %v1668
  %2479 = vmatpush.bf16.msra.mxu0 %v1667
  %2480 = vmatpush.bf16.msra.mxu0 %v1666
  %2481 = vmatpush.bf16.msra.mxu0 %v1665
  %2482 = vmatpush.bf16.msra.mxu0 %v1664
  %2483 = vmatpush.bf16.msra.mxu0 %v1663
  %2484 = vmatpush.bf16.msra.mxu0 %v1662
  %2485 = vmatmul.bf16.gmra.mxu0 %v751
  %v2486 = vpop.f32.mrf.mxu0
  %v2487 = vadd.f32 %v2448, %v2486
  %v2488 = vpop.f32.mrf.mxu0
  %v2489 = vadd.f32 %v2450, %v2488
  %2490 = vmatmul.bf16.gmra.mxu0 %v769
  %v2491 = vpop.f32.mrf.mxu0
  %v2492 = vadd.f32 %v2453, %v2491
  %v2493 = vpop.f32.mrf.mxu0
  %v2494 = vadd.f32 %v2455, %v2493
  %2495 = vmatmul.bf16.gmra.mxu0 %v787
  %v2496 = vpop.f32.mrf.mxu0
  %v2497 = vadd.f32 %v2458, %v2496
  %v2498 = vpop.f32.mrf.mxu0
  %v2499 = vadd.f32 %v2460, %v2498
  %2500 = vmatmul.bf16.gmra.mxu0 %v805
  %v2501 = vpop.f32.mrf.mxu0
  %v2502 = vadd.f32 %v2463, %v2501
  %v2503 = vpop.f32.mrf.mxu0
  %v2504 = vadd.f32 %v2465, %v2503
  %2505 = vmatmul.bf16.gmra.mxu0 %v823
  %v2506 = vpop.f32.mrf.mxu0
  %v2507 = vadd.f32 %v2468, %v2506
  %v2508 = vpop.f32.mrf.mxu0
  %v2509 = vadd.f32 %v2470, %v2508
  %2510 = vmatmul.bf16.gmra.mxu0 %v841
  %v2511 = vpop.f32.mrf.mxu0
  %v2512 = vadd.f32 %v2473, %v2511
  %v2513 = vpop.f32.mrf.mxu0
  %v2514 = vadd.f32 %v2475, %v2513
  %2515 = vdwg.mxu0
  %vm2516 = vcmask 400384
  %v2517 = vsel %vm2516, %v2487, 0.0
  %2518 = vadd.xlane.f32.xlu0 %v2517
  %v2519 = vpop.xlane.xlu0 %2518
  %v2520 = vsel %vm2516, %v2489, 0.0
  %2521 = vadd.xlane.f32.xlu0 %v2520
  %v2522 = vpop.xlane.xlu0 %2521
  %v2523 = vsel %vm2516, %v2492, 0.0
  %2524 = vadd.xlane.f32.xlu0 %v2523
  %v2525 = vpop.xlane.xlu0 %2524
  %v2526 = vsel %vm2516, %v2494, 0.0
  %2527 = vadd.xlane.f32.xlu0 %v2526
  %v2528 = vpop.xlane.xlu0 %2527
  %v2529 = vsel %vm2516, %v2497, 0.0
  %2530 = vadd.xlane.f32.xlu0 %v2529
  %v2531 = vpop.xlane.xlu0 %2530
  %v2532 = vsel %vm2516, %v2499, 0.0
  %2533 = vadd.xlane.f32.xlu0 %v2532
  %v2534 = vpop.xlane.xlu0 %2533
  %v2535 = vsel %vm2516, %v2502, 0.0
  %2536 = vadd.xlane.f32.xlu0 %v2535
  %v2537 = vpop.xlane.xlu0 %2536
  %v2538 = vsel %vm2516, %v2504, 0.0
  %2539 = vadd.xlane.f32.xlu0 %v2538
  %v2540 = vpop.xlane.xlu0 %2539
  %v2541 = vsel %vm2516, %v2507, 0.0
  %2542 = vadd.xlane.f32.xlu0 %v2541
  %v2543 = vpop.xlane.xlu0 %2542
  %v2544 = vsel %vm2516, %v2509, 0.0
  %2545 = vadd.xlane.f32.xlu0 %v2544
  %v2546 = vpop.xlane.xlu0 %2545
  %v2547 = vsel %vm2516, %v2512, 0.0
  %2548 = vadd.xlane.f32.xlu0 %v2547
  %v2549 = vpop.xlane.xlu0 %2548
  %v2550 = vsel %vm2516, %v2514, 0.0
  %2551 = vadd.xlane.f32.xlu0 %v2550
  %v2552 = vpop.xlane.xlu0 %2551
  %v2553 = vrcp.pop 49.0
  %v2554 = vmul.f32 49.0, %v2553
  %v2555 = vsub.f32 1.0, %v2554
  %v2556 = vmul.f32 %v2553, %v2555
  %v2557 = vadd.f32 %v2553, %v2556
  %vm2558 = vweird.f32 %v2553
  %v2559 = vsel %vm2558, %v2553, %v2557
  %v2560 = vmul.f32 %v2519, %v2559
  %v2561 = vmul.f32 %v2522, %v2559
  %v2562 = vmul.f32 %v2525, %v2559
  %v2563 = vmul.f32 %v2528, %v2559
  %v2564 = vmul.f32 %v2531, %v2559
  %v2565 = vmul.f32 %v2534, %v2559
  %v2566 = vmul.f32 %v2537, %v2559
  %v2567 = vmul.f32 %v2540, %v2559
  %v2568 = vmul.f32 %v2543, %v2559
  %v2569 = vmul.f32 %v2546, %v2559
  %v2570 = vmul.f32 %v2549, %v2559
  %v2571 = vmul.f32 %v2552, %v2559
  %v2572 = vld [vmem:[%s2] sm:$0xff]
  %v2573 = vld [vmem:[%s2 + $0x8] sm:$0xff]
  %v2574 = vld [vmem:[%s2 + $0x10] sm:$0xff]
  %v2575 = vld [vmem:[%s2 + $0x18] sm:$0xff]
  %v2576 = vld [vmem:[%s2 + $0x20] sm:$0xff]
  %v2577 = vld [vmem:[%s2 + $0x28] sm:$0xff]
  %v2578 = vld [vmem:[%s2 + $0x30] sm:$0xff]
  %v2579 = vld [vmem:[%s2 + $0x38] sm:$0xff]
  %v2580 = vld [vmem:[%s2 + $0x40] sm:$0xff]
  %v2581 = vld [vmem:[%s2 + $0x48] sm:$0xff]
  %v2582 = vld [vmem:[%s2 + $0x50] sm:$0xff]
  %v2583 = vld [vmem:[%s2 + $0x58] sm:$0xff]
  %v2584 = vadd.f32 %v2560, %v2572
  %v2585 = vadd.f32 %v2561, %v2573
  %v2586 = vadd.f32 %v2562, %v2574
  %v2587 = vadd.f32 %v2563, %v2575
  %v2588 = vadd.f32 %v2564, %v2576
  %v2589 = vadd.f32 %v2565, %v2577
  %v2590 = vadd.f32 %v2566, %v2578
  %v2591 = vadd.f32 %v2567, %v2579
  %v2592 = vadd.f32 %v2568, %v2580
  %v2593 = vadd.f32 %v2569, %v2581
  %v2594 = vadd.f32 %v2570, %v2582
  %v2595 = vadd.f32 %v2571, %v2583
  %vm2596 = vcmask 7168
  %2597 = vst.msk [vmem:[%s3] sm:$0xff] %vm2596, %v2584
  %2598 = vst.msk [vmem:[%s3 + $0x8] sm:$0xff] %vm2596, %v2585
  %2599 = vst.msk [vmem:[%s3 + $0x10] sm:$0xff] %vm2596, %v2586
  %2600 = vst.msk [vmem:[%s3 + $0x18] sm:$0xff] %vm2596, %v2587
  %2601 = vst.msk [vmem:[%s3 + $0x20] sm:$0xff] %vm2596, %v2588
  %2602 = vst.msk [vmem:[%s3 + $0x28] sm:$0xff] %vm2596, %v2589
  %2603 = vst.msk [vmem:[%s3 + $0x30] sm:$0xff] %vm2596, %v2590
  %2604 = vst.msk [vmem:[%s3 + $0x38] sm:$0xff] %vm2596, %v2591
  %2605 = vst.msk [vmem:[%s3 + $0x40] sm:$0xff] %vm2596, %v2592
  %2606 = vst.msk [vmem:[%s3 + $0x48] sm:$0xff] %vm2596, %v2593
  %2607 = vst.msk [vmem:[%s3 + $0x50] sm:$0xff] %vm2596, %v2594
  %2608 = vst.msk [vmem:[%s3 + $0x58] sm:$0xff] %vm2596, %v2595
  // Predicated region
  $region14: #{mean_conv2d.1} parent=0 // pred_check
    _
  $region15: #{mean_conv2d.1} parent=0 // pred_check_branch
    %2610 = sbr.rel (0) target = $region17
  $region16: #{mean_conv2d.1} parent=0 // pred_region
    _
  $region17: #{mean_conv2d.1} parent=0 // pred_fallthru
    _
  // Predicated region
  $region18: #{mean_conv2d.1} parent=0 // pred_check
    _
  $region19: #{mean_conv2d.1} parent=0 // pred_check_branch
    %2612 = sbr.rel (0) target = $region21
  $region20: #{mean_conv2d.1} parent=0 // pred_region
    _
  $region21: #{mean_conv2d.1} parent=0 // pred_fallthru
    _

</llo_original>
